<compile_context>
chip_gen: v7x
topology: tpu7x:2x2x1
jax: 0.10.0
libtpu: 0.0.40
codegen_flags: <defaults>
</compile_context>

<pallas_src>
import math

import numpy as np
import jax
import jax.numpy as jnp
from jax.experimental import pallas as pl
from jax.experimental.pallas import tpu as pltpu

# ------------------------- scaled-down configuration -------------------------
H = 32          # BERT hidden size (stands in for 768)
NH = 2          # attention heads
DH = H // NH
IM = 64         # FFN intermediate size
VOCAB = 50
MAXPOS = 16
RNN_HID = 16    # segment-encoder hidden (stands in for 150); bi-dir -> 2*RNN_HID
MAN_IN = 27
MAN_OUT = 5
FEAT = H + MAN_OUT + 2 * RNN_HID
PE_MAX = 64

_VMEM = pltpu.MemorySpace.VMEM


def _vmem_specs(n):
    return [pl.BlockSpec(memory_space=_VMEM) for _ in range(n)]


# ------------------------- fused mini-BERT layer kernel -----------------------
def _bert_layer_kernel(emb_ref, mask_ref,
                       eg_ref, eb_ref,
                       wqkv_ref, bqkv_ref,
                       wo_ref, bo_ref, ag_ref, ab_ref,
                       wi_ref, bi_ref, wo2_ref, bo2_ref, fg_ref, fb_ref,
                       o_ref):
    n, l, h = emb_ref.shape
    nl = n * l

    def ln(x, g, b):
        mu = jnp.mean(x, axis=-1, keepdims=True)
        var = jnp.mean((x - mu) ** 2, axis=-1, keepdims=True)
        return (x - mu) * jax.lax.rsqrt(var + 1e-12) * g + b

    # embedding LayerNorm (f32)
    x = ln(emb_ref[...].reshape(nl, h), eg_ref[...], eb_ref[...])

    # fused QKV projection: bf16 operands, f32 accumulation, 128-lane output.
    qkv = jnp.dot(x.astype(jnp.bfloat16), wqkv_ref[...],
                  preferred_element_type=jnp.float32) + bqkv_ref[...]
    qkv = qkv.reshape(n, l, 4 * H)

    bias = (mask_ref[...] - 1.0) * 10000.0          # [n, 1, l] additive mask (f32)
    scale = 1.0 / math.sqrt(DH)

    # per-head attention with the output projection folded into the head loop
    # (no lane-axis concat of 16-wide head chunks).
    attn = jnp.zeros((nl, h), jnp.float32)
    wo = wo_ref[...]
    for hd in range(NH):
        q_h = qkv[:, :, hd * DH:(hd + 1) * DH]
        k_h = qkv[:, :, H + hd * DH:H + (hd + 1) * DH]
        v_h = qkv[:, :, 2 * H + hd * DH:2 * H + (hd + 1) * DH]
        s = jnp.einsum("nqd,nkd->nqk",
                       q_h.astype(jnp.bfloat16), k_h.astype(jnp.bfloat16),
                       preferred_element_type=jnp.float32) * scale
        s = s + bias
        s = s - jnp.max(s, axis=-1, keepdims=True)
        p = jnp.exp(s)
        p = p * pl.reciprocal(jnp.sum(p, axis=-1, keepdims=True), approx=True)
        ctx = jnp.einsum("nqk,nkd->nqd",
                         p.astype(jnp.bfloat16), v_h.astype(jnp.bfloat16),
                         preferred_element_type=jnp.float32)
        attn = attn + jnp.dot(ctx.reshape(nl, DH), wo[hd * DH:(hd + 1) * DH, :],
                              preferred_element_type=jnp.float32)

    x = ln(x + attn + bo_ref[...], ag_ref[...], ab_ref[...])

    inter = jax.nn.gelu(jnp.dot(x.astype(jnp.bfloat16), wi_ref[...],
                                preferred_element_type=jnp.float32) + bi_ref[...])
    y = jnp.dot(inter.astype(jnp.bfloat16), wo2_ref[...],
                preferred_element_type=jnp.float32) + bo2_ref[...]
    x = ln(x + y, fg_ref[...], fb_ref[...])

    o_ref[...] = x.reshape(n, l, h)


def bert_encode(bp, input_ids, attn_mask):
    """Mini 1-layer BERT encoder, one fused pallas_call. Returns [N, L, H]."""
    N, L = input_ids.shape
    emb = (jnp.take(bp["word_emb"], input_ids, axis=0)
           + bp["pos_emb"][:L][None, :, :]
           + bp["type_emb0"][None, None, :])
    amask = attn_mask.astype(jnp.float32)

    grid_n = min(2, N)                 # one block per TensorCore on v7x
    nblk = -(-N // grid_n)
    npad = grid_n * nblk
    if npad != N:
        emb = jnp.pad(emb, ((0, npad - N), (0, 0), (0, 0)))
        amask = jnp.pad(amask, ((0, npad - N), (0, 0)))
    amask3 = amask.reshape(npad, 1, L)

    weights = (bp["emb_ln_g"], bp["emb_ln_b"], bp["wqkv"], bp["bqkv"],
               bp["wo"], bp["bo"], bp["attn_ln_g"], bp["attn_ln_b"],
               bp["wi"], bp["bi"], bp["wo2"], bp["bo2"],
               bp["ffn_ln_g"], bp["ffn_ln_b"])

    def full_spec(a):
        nd = a.ndim
        return pl.BlockSpec(a.shape, lambda i, _n=nd: (0,) * _n)

    out = pl.pallas_call(
        _bert_layer_kernel,
        out_shape=jax.ShapeDtypeStruct((npad, L, H), jnp.float32),
        grid=(grid_n,),
        in_specs=[pl.BlockSpec((nblk, L, H), lambda i: (i, 0, 0)),
                  pl.BlockSpec((nblk, 1, L), lambda i: (i, 0, 0))]
                 + [full_spec(w) for w in weights],
        out_specs=pl.BlockSpec((nblk, L, H), lambda i: (i, 0, 0)),
        compiler_params=pltpu.CompilerParams(
            dimension_semantics=("parallel",)),
    )(emb, amask3, *weights)
    return out[:N]


# ---------------------------- fused tail kernel -------------------------------
def _tail_kernel(hid_ref, elen_ref, docs_ref, dmask_ref, pdocs_ref, pmask_ref,
                 man_ref, cnt_ref, mn_ref, mx_ref, lab_ref, mn_row_ref, mx_row_ref,
                 ga_wk_ref, ga_v_ref, ba_wk_ref, ba_wq_ref, ba_v_ref,
                 manw_ref, manb_ref, wih_ref, whh_ref, ball_ref,
                 lwd_ref, lwm_ref, lwr_ref, linb_ref,
                 pred_ref, loss_ref):
    B = cnt_ref.shape[0]
    BS, L, h = hid_ref.shape
    S = BS // B
    R = RNN_HID

    # ---- per-sentence segment means (zero vectors for padded sentences) ----
    hid = hid_ref[...]
    elen = elen_ref[...]                                          # [BS, 1]
    pos = jax.lax.broadcasted_iota(jnp.float32, (BS, L, 1), 1)
    tok_mask = (pos < elen[:, :, None]).astype(jnp.float32)
    seg_sum = jnp.sum(hid * tok_mask, axis=1)                     # [BS, H]
    inv_len = pl.reciprocal(jnp.maximum(elen, 1.0), approx=True)
    seg = jnp.where(elen > 0.0, seg_sum * inv_len, 0.0)           # [BS, H]

    # ---- attention pooling helper ----
    def pool(key, mask, wk, v, qproj=None):
        b, t, hh = key.shape
        kp = jnp.dot(key.reshape(b * t, hh), wk,
                     preferred_element_type=jnp.float32).reshape(b, t, hh)
        e = kp if qproj is None else kp + qproj[:, None, :]
        e = jnp.tanh(e)
        sc = jnp.sum(e * v[None, :, :], axis=-1)                  # [b, t]
        sc = jnp.where(mask > 0.0, sc, -1e9)
        sc = sc - jnp.max(sc, axis=-1, keepdims=True)
        w = jnp.exp(sc)
        w = w * pl.reciprocal(jnp.sum(w, axis=-1, keepdims=True), approx=True)
        return jnp.sum(w[:, :, None] * key, axis=1)               # [b, hh]

    prompt_vec = pool(pdocs_ref[...], pmask_ref[...], ga_wk_ref[...], ga_v_ref[...])
    qproj = jnp.dot(prompt_vec, ba_wq_ref[...], preferred_element_type=jnp.float32)
    doc_feature = jnp.tanh(pool(docs_ref[...], dmask_ref[...],
                                ba_wk_ref[...], ba_v_ref[...], qproj))

    # ---- manual features: tanh(Linear(dropout(x))); dropout is identity ----
    man = jnp.tanh(jnp.dot(man_ref[...], manw_ref[...],
                           preferred_element_type=jnp.float32) + manb_ref[...])

    # ---- bi-LSTM segment encoder: packed gates (8R=128 lanes), fused dirs ----
    xw = (jnp.dot(seg, wih_ref[...], preferred_element_type=jnp.float32)
          + ball_ref[...]).reshape(B, S, 8 * R)
    whh = whh_ref[...]                                            # [2R, 8R] block-diag
    counts = cnt_ref[...]                                         # [B, 1] float

    def lstm_dir(g, hprev, cprev, valid):
        i = jax.nn.sigmoid(g[:, 0 * R:1 * R])
        f = jax.nn.sigmoid(g[:, 1 * R:2 * R])
        gg = jnp.tanh(g[:, 2 * R:3 * R])
        o = jax.nn.sigmoid(g[:, 3 * R:4 * R])
        c_new = f * cprev + i * gg
        h_new = o * jnp.tanh(c_new)
        return jnp.where(valid, h_new, hprev), jnp.where(valid, c_new, cprev)

    def step(t, carry):
        h_f, c_f, h_b, c_b = carry
        tb = S - 1 - t
        hcat = jnp.concatenate([h_f, h_b], axis=-1)               # [B, 2R]
        hw = jnp.dot(hcat, whh, preferred_element_type=jnp.float32)   # [B, 8R]
        xf = jax.lax.dynamic_slice_in_dim(xw, t, 1, axis=1)[:, 0, :]
        xb = jax.lax.dynamic_slice_in_dim(xw, tb, 1, axis=1)[:, 0, :]
        gf = hw[:, :4 * R] + xf[:, :4 * R]
        gb = hw[:, 4 * R:] + xb[:, 4 * R:]
        vf = counts > jnp.asarray(t).astype(jnp.float32)
        vb = counts > jnp.asarray(tb).astype(jnp.float32)
        h_f, c_f = lstm_dir(gf, h_f, c_f, vf)
        h_b, c_b = lstm_dir(gb, h_b, c_b, vb)
        return h_f, c_f, h_b, c_b

    z = jnp.zeros((B, R), jnp.float32)
    h_f, c_f, h_b, c_b = jax.lax.fori_loop(0, S, step, (z, z, z, z), unroll=True)
    final_h = jnp.tanh(jnp.concatenate([h_f, h_b], axis=-1))      # [B, 2R]

    # ---- regressor: the feature concat is folded into three small matmuls ----
    grade = (jnp.dot(doc_feature, lwd_ref[...], preferred_element_type=jnp.float32)
             + jnp.dot(man, lwm_ref[...], preferred_element_type=jnp.float32)
             + jnp.dot(final_h, lwr_ref[...], preferred_element_type=jnp.float32)
             + linb_ref[...])                                      # [B, 1]

    # reproduces torch broadcast: [B,1] * [B] -> [B,B]
    pred_ref[...] = grade * (mx_row_ref[...] - mn_row_ref[...]) + mn_row_ref[...]
    lab_n = (lab_ref[...] - mn_ref[...]) / (mx_ref[...] - mn_ref[...])
    d = grade - lab_n
    loss_ref[...] = jnp.sum(d * d, axis=0, keepdims=True)          # reduction='sum'


def tail(params, hid, eff, docs, dmask, pdocs, pmask, manual, counts, mn, mx, lab):
    B = docs.shape[0]
    args = (hid, eff, docs, dmask, pdocs, pmask, manual, counts,
            mn, mx, lab, mn.reshape(1, B), mx.reshape(1, B),
            params["ga_wk"], params["ga_v"], params["ba_wk"], params["ba_wq"],
            params["ba_v"], params["man_w"], params["man_b"],
            params["rnn"]["wih_all"], params["rnn"]["whh_blk"], params["rnn"]["b_all"],
            params["lw_doc"], params["lw_man"], params["lw_rnn"], params["lin_b"])
    pred, loss = pl.pallas_call(
        _tail_kernel,
        out_shape=(jax.ShapeDtypeStruct((B, B), jnp.float32),
                   jax.ShapeDtypeStruct((1, 1), jnp.float32)),
        in_specs=_vmem_specs(len(args)),
        out_specs=(pl.BlockSpec(memory_space=_VMEM),
                   pl.BlockSpec(memory_space=_VMEM)),
    )(*args)
    return pred, loss


# ------------------------------- model pieces --------------------------------
def sinusoidal_pe(max_len, dim):
    pe = np.zeros((max_len, dim), np.float32)
    pos = np.arange(max_len)[:, None].astype(np.float32)
    div = np.exp(np.arange(0, dim, 2).astype(np.float32) * (-math.log(10000.0) / dim))
    pe[:, 0::2] = np.sin(pos * div)
    pe[:, 1::2] = np.cos(pos * div)
    return jnp.asarray(pe)


def init_params(key):
    keys = jax.random.split(key, 64)
    it = iter(keys)

    def nrm(shape, scale=0.02):
        return jax.random.normal(next(it), shape, jnp.float32) * scale

    wq, wk, wv = nrm((H, H)), nrm((H, H)), nrm((H, H))
    # fused QKV weight padded to [H, 4H] = [32, 128] for a lane-dense matmul.
    wqkv = jnp.concatenate([wq, wk, wv, jnp.zeros((H, H), jnp.float32)], axis=1)
    bert = dict(
        word_emb=nrm((VOCAB, H)), pos_emb=nrm((MAXPOS, H)), type_emb0=nrm((H,)),
        emb_ln_g=jnp.ones((1, H), jnp.float32), emb_ln_b=jnp.zeros((1, H), jnp.float32),
        wqkv=wqkv.astype(jnp.bfloat16), bqkv=jnp.zeros((1, 4 * H), jnp.float32),
        wo=nrm((H, H)), bo=jnp.zeros((1, H), jnp.float32),
        attn_ln_g=jnp.ones((1, H), jnp.float32), attn_ln_b=jnp.zeros((1, H), jnp.float32),
        wi=nrm((H, IM)).astype(jnp.bfloat16), bi=jnp.zeros((1, IM), jnp.float32),
        wo2=nrm((IM, H)).astype(jnp.bfloat16), bo2=jnp.zeros((1, H), jnp.float32),
        ffn_ln_g=jnp.ones((1, H), jnp.float32), ffn_ln_b=jnp.zeros((1, H), jnp.float32),
    )

    R = RNN_HID
    wih_f, whh_f = nrm((H, 4 * R), 0.1), nrm((R, 4 * R), 0.1)
    wih_b, whh_b = nrm((H, 4 * R), 0.1), nrm((R, 4 * R), 0.1)
    zr = jnp.zeros((R, 4 * R), jnp.float32)
    rnn = dict(
        wih_all=jnp.concatenate([wih_f, wih_b], axis=1),                  # [H, 8R]
        whh_blk=jnp.concatenate(
            [jnp.concatenate([whh_f, zr], axis=1),
             jnp.concatenate([zr, whh_b], axis=1)], axis=0),              # [2R, 8R]
        b_all=jnp.zeros((1, 8 * R), jnp.float32),
    )

    lin_w = jax.random.uniform(next(it), (FEAT, 1), jnp.float32, -0.1, 0.1)
    return dict(
        bert=bert, rnn=rnn, pe_table=sinusoidal_pe(PE_MAX, H),
        ga_wk=nrm((H, H), 0.1), ga_v=nrm((1, H), 0.1),
        ba_wk=nrm((H, H), 0.1), ba_wq=nrm((H, H), 0.1), ba_v=nrm((1, H), 0.1),
        man_w=nrm((MAN_IN, MAN_OUT), 0.1), man_b=jnp.zeros((1, MAN_OUT), jnp.float32),
        lw_doc=lin_w[:H], lw_man=lin_w[H:H + MAN_OUT], lw_rnn=lin_w[H + MAN_OUT:],
        lin_b=jnp.zeros((1, 1), jnp.float32),
    )


def build_doc_gather(sent_counts, sent_lens, S, L):
    """Static host metadata -> flat gather indices, mask, and max doc length."""
    B = len(sent_counts)
    doc_lens = [int(sum(sent_lens[i][:sent_counts[i]])) for i in range(B)]
    max_len = max(doc_lens)
    idx = np.zeros((B, max_len), np.int32)
    for i in range(B):
        t = 0
        for j in range(sent_counts[i]):
            for p in range(sent_lens[i][j]):
                idx[i, t] = (i * S + j) * L + p
                t += 1
    mask = (np.arange(max_len)[None, :] < np.array(doc_lens)[:, None]).astype(np.float32)
    return jnp.asarray(idx), jnp.asarray(mask), max_len


def forward(params, inputs, mask, sent_counts, sent_lens,
            prompt_inputs, prompt_mask, prompt_sent_counts, prompt_sent_lens,
            min_score, max_score, manual_feature, label=None):
    B, S, L = inputs.shape
    PS, PLN = prompt_inputs.shape[1], prompt_inputs.shape[2]

    hid = bert_encode(params["bert"], inputs.reshape(-1, L), mask.reshape(-1, L))       # [B*S, L, H]
    p_hid = bert_encode(params["bert"], prompt_inputs.reshape(-1, PLN),
                        prompt_mask.reshape(-1, PLN))                                   # [B*PS, PLN, H]
    # dropout layers: identity in eval mode.

    pe = params["pe_table"]

    # ragged doc assembly: ONE gather per document set (static metadata).
    d_idx, d_mask, d_len = build_doc_gather(sent_counts, sent_lens, S, L)
    docs = jnp.take(hid.reshape(B * S * L, H), d_idx.reshape(-1), axis=0)
    docs = (docs.reshape(B, d_len, H) + pe[:d_len][None, :, :]) * d_mask[:, :, None]

    p_idx, p_msk, p_len = build_doc_gather(prompt_sent_counts, prompt_sent_lens, PS, PLN)
    p_docs = jnp.take(p_hid.reshape(B * PS * PLN, H), p_idx.reshape(-1), axis=0)
    p_docs = (p_docs.reshape(B, p_len, H) + pe[:p_len][None, :, :]) * p_msk[:, :, None]

    # per-sentence effective lengths (0 for padded sentences) — static metadata.
    eff = np.zeros((B * S, 1), np.float32)
    for i in range(B):
        for j in range(sent_counts[i]):
            eff[i * S + j, 0] = sent_lens[i][j]
    eff = jnp.asarray(eff)

    # sort/unsort by sent_counts around the LSTM is an identity pair for a
    # length-masked LSTM, so it is omitted.
    counts = jnp.asarray(np.array(sent_counts, np.float32).reshape(B, 1))
    mn = min_score.astype(jnp.float32).reshape(B, 1)
    mx = max_score.astype(jnp.float32).reshape(B, 1)
    lab = (label if label is not None else jnp.zeros((B,), jnp.float32))
    lab = lab.astype(jnp.float32).reshape(B, 1)

    prediction, loss = tail(params, hid, eff, docs, d_mask, p_docs, p_msk,
                            manual_feature.astype(jnp.float32), counts, mn, mx, lab)
    loss_out = loss[0, 0] if label is not None else None
    return {"loss": loss_out, "prediction": prediction}


# ------------------------------------ main ------------------------------------
if __name__ == "__main__":
    key = jax.random.PRNGKey(0)
    pkey, dkey = jax.random.split(key)
    params = init_params(pkey)

    B, S, L = 2, 3, 8
    PS, PLN = 2, 8
    sent_counts = [3, 2]
    sent_lens = [[5, 7, 4], [6, 3, 1]]
    prompt_sent_counts = [2, 1]
    prompt_sent_lens = [[6, 4], [7, 1]]

    k1, k2, k3, k4 = jax.random.split(dkey, 4)
    inputs = jax.random.randint(k1, (B, S, L), 0, VOCAB)
    prompt_inputs = jax.random.randint(k2, (B, PS, PLN), 0, VOCAB)

    mask_np = np.zeros((B, S, L), np.float32)
    for i in range(B):
        for j in range(sent_counts[i]):
            mask_np[i, j, :sent_lens[i][j]] = 1.0
    pmask_np = np.zeros((B, PS, PLN), np.float32)
    for i in range(B):
        for j in range(prompt_sent_counts[i]):
            pmask_np[i, j, :prompt_sent_lens[i][j]] = 1.0
    mask = jnp.asarray(mask_np)
    prompt_mask = jnp.asarray(pmask_np)

    manual_feature = jax.random.normal(k3, (B, MAN_IN), jnp.float32)
    min_score = jnp.zeros((B,), jnp.float32)
    max_score = jnp.full((B,), 10.0, jnp.float32)
    label = jax.random.uniform(k4, (B,), jnp.float32, 1.0, 9.0)

    out = forward(params, inputs, mask, sent_counts, sent_lens,
                  prompt_inputs, prompt_mask, prompt_sent_counts, prompt_sent_lens,
                  min_score, max_score, manual_feature, label)
    jax.block_until_ready(out["prediction"])
    jax.block_until_ready(out["loss"])
    print("KERNEL_OK")
</pallas_src>

<mosaic_0001>
module attributes {stable_mosaic.version = 11 : i64} {
  func.func @_bert_layer_kernel(%arg0: i32, %arg1: memref<3x8x32xf32, #tpu.memory_space<vmem>>, %arg2: memref<3x1x8xf32, #tpu.memory_space<vmem>>, %arg3: memref<1x32xf32, #tpu.memory_space<vmem>>, %arg4: memref<1x32xf32, #tpu.memory_space<vmem>>, %arg5: memref<32x128xbf16, #tpu.memory_space<vmem>>, %arg6: memref<1x128xf32, #tpu.memory_space<vmem>>, %arg7: memref<32x32xf32, #tpu.memory_space<vmem>>, %arg8: memref<1x32xf32, #tpu.memory_space<vmem>>, %arg9: memref<1x32xf32, #tpu.memory_space<vmem>>, %arg10: memref<1x32xf32, #tpu.memory_space<vmem>>, %arg11: memref<32x64xbf16, #tpu.memory_space<vmem>>, %arg12: memref<1x64xf32, #tpu.memory_space<vmem>>, %arg13: memref<64x32xbf16, #tpu.memory_space<vmem>>, %arg14: memref<1x32xf32, #tpu.memory_space<vmem>>, %arg15: memref<1x32xf32, #tpu.memory_space<vmem>>, %arg16: memref<1x32xf32, #tpu.memory_space<vmem>>, %arg17: memref<3x8x32xf32, #tpu.memory_space<vmem>>) attributes {dimension_semantics = [#tpu.dimension_semantics<parallel>], iteration_bounds = array<i64: 2>, scalar_prefetch = 0 : i64, scratch_operands = 0 : i64, tpu.core_type = #tpu.core_type<tc>, window_params = [{transform_indices = @transform_0, window_bounds = array<i64: 3, 8, 32>}, {transform_indices = @transform_1, window_bounds = array<i64: 3, 1, 8>}, {pipeline_mode = #tpu.pipeline_mode<synchronous>, transform_indices = @transform_2, window_bounds = array<i64: 1, 32>}, {pipeline_mode = #tpu.pipeline_mode<synchronous>, transform_indices = @transform_3, window_bounds = array<i64: 1, 32>}, {pipeline_mode = #tpu.pipeline_mode<synchronous>, transform_indices = @transform_4, window_bounds = array<i64: 32, 128>}, {pipeline_mode = #tpu.pipeline_mode<synchronous>, transform_indices = @transform_5, window_bounds = array<i64: 1, 128>}, {pipeline_mode = #tpu.pipeline_mode<synchronous>, transform_indices = @transform_6, window_bounds = array<i64: 32, 32>}, {pipeline_mode = #tpu.pipeline_mode<synchronous>, transform_indices = @transform_7, window_bounds = array<i64: 1, 32>}, {pipeline_mode = #tpu.pipeline_mode<synchronous>, transform_indices = @transform_8, window_bounds = array<i64: 1, 32>}, {pipeline_mode = #tpu.pipeline_mode<synchronous>, transform_indices = @transform_9, window_bounds = array<i64: 1, 32>}, {pipeline_mode = #tpu.pipeline_mode<synchronous>, transform_indices = @transform_10, window_bounds = array<i64: 32, 64>}, {pipeline_mode = #tpu.pipeline_mode<synchronous>, transform_indices = @transform_11, window_bounds = array<i64: 1, 64>}, {pipeline_mode = #tpu.pipeline_mode<synchronous>, transform_indices = @transform_12, window_bounds = array<i64: 64, 32>}, {pipeline_mode = #tpu.pipeline_mode<synchronous>, transform_indices = @transform_13, window_bounds = array<i64: 1, 32>}, {pipeline_mode = #tpu.pipeline_mode<synchronous>, transform_indices = @transform_14, window_bounds = array<i64: 1, 32>}, {pipeline_mode = #tpu.pipeline_mode<synchronous>, transform_indices = @transform_15, window_bounds = array<i64: 1, 32>}, {transform_indices = @transform_16, window_bounds = array<i64: 3, 8, 32>}]} {
    %c0 = arith.constant 0 : index
    %c0_0 = arith.constant 0 : index
    %c0_1 = arith.constant 0 : index
    %0 = vector.load %arg1[%c0, %c0_0, %c0_1] : memref<3x8x32xf32, #tpu.memory_space<vmem>>, vector<3x8x32xf32>
    %1 = vector.shape_cast %0 : vector<3x8x32xf32> to vector<24x32xf32>
    %c0_2 = arith.constant 0 : index
    %c0_3 = arith.constant 0 : index
    %2 = vector.load %arg3[%c0_2, %c0_3] : memref<1x32xf32, #tpu.memory_space<vmem>>, vector<1x32xf32>
    %c0_4 = arith.constant 0 : index
    %c0_5 = arith.constant 0 : index
    %3 = vector.load %arg4[%c0_4, %c0_5] : memref<1x32xf32, #tpu.memory_space<vmem>>, vector<1x32xf32>
    %cst = arith.constant dense<0.000000e+00> : vector<24xf32>
    %4 = vector.multi_reduction <add>, %1, %cst [1] : vector<24x32xf32> to vector<24xf32>
    %5 = vector.shape_cast %4 : vector<24xf32> to vector<24x1xf32>
    %cst_6 = arith.constant 3.200000e+01 : f32
    %6 = vector.broadcast %cst_6 : f32 to vector<24x1xf32>
    %7 = arith.divf %5, %6 : vector<24x1xf32>
    %8 = vector.broadcast %7 : vector<24x1xf32> to vector<24x32xf32>
    %9 = arith.subf %1, %8 : vector<24x32xf32>
    %10 = arith.mulf %9, %9 : vector<24x32xf32>
    %cst_7 = arith.constant dense<0.000000e+00> : vector<24xf32>
    %11 = vector.multi_reduction <add>, %10, %cst_7 [1] : vector<24x32xf32> to vector<24xf32>
    %12 = vector.shape_cast %11 : vector<24xf32> to vector<24x1xf32>
    %cst_8 = arith.constant 3.200000e+01 : f32
    %13 = vector.broadcast %cst_8 : f32 to vector<24x1xf32>
    %14 = arith.divf %12, %13 : vector<24x1xf32>
    %15 = vector.broadcast %7 : vector<24x1xf32> to vector<24x32xf32>
    %16 = arith.subf %1, %15 : vector<24x32xf32>
    %cst_9 = arith.constant 9.99999996E-13 : f32
    %17 = vector.broadcast %cst_9 : f32 to vector<24x1xf32>
    %18 = arith.addf %14, %17 : vector<24x1xf32>
    %19 = math.rsqrt %18 : vector<24x1xf32>
    %20 = vector.broadcast %19 : vector<24x1xf32> to vector<24x32xf32>
    %21 = arith.mulf %16, %20 : vector<24x32xf32>
    %22 = vector.broadcast %2 : vector<1x32xf32> to vector<24x32xf32>
    %23 = arith.mulf %21, %22 : vector<24x32xf32>
    %24 = vector.broadcast %3 : vector<1x32xf32> to vector<24x32xf32>
    %25 = arith.addf %23, %24 : vector<24x32xf32>
    %26 = arith.truncf %25 : vector<24x32xf32> to vector<24x32xbf16>
    %c0_10 = arith.constant 0 : index
    %c0_11 = arith.constant 0 : index
    %27 = vector.load %arg5[%c0_10, %c0_11] : memref<32x128xbf16, #tpu.memory_space<vmem>>, vector<32x128xbf16>
    %cst_12 = arith.constant dense<0.000000e+00> : vector<24x128xf32>
    %28 = tpu.matmul %26, %27, %cst_12 {dimension_numbers = #tpu.dot_dimension_numbers<[1], [0], [0], [1], [0, 0, 1, 1], [], []>} : vector<24x32xbf16>, vector<32x128xbf16>, vector<24x128xf32> -> vector<24x128xf32>
    %c0_13 = arith.constant 0 : index
    %c0_14 = arith.constant 0 : index
    %29 = vector.load %arg6[%c0_13, %c0_14] : memref<1x128xf32, #tpu.memory_space<vmem>>, vector<1x128xf32>
    %30 = vector.broadcast %29 : vector<1x128xf32> to vector<24x128xf32>
    %31 = arith.addf %28, %30 : vector<24x128xf32>
    %32 = vector.shape_cast %31 : vector<24x128xf32> to vector<3x8x128xf32>
    %c0_15 = arith.constant 0 : index
    %c0_16 = arith.constant 0 : index
    %c0_17 = arith.constant 0 : index
    %33 = vector.load %arg2[%c0_15, %c0_16, %c0_17] : memref<3x1x8xf32, #tpu.memory_space<vmem>>, vector<3x1x8xf32>
    %cst_18 = arith.constant 1.000000e+00 : f32
    %34 = vector.broadcast %cst_18 : f32 to vector<3x1x8xf32>
    %35 = arith.subf %33, %34 : vector<3x1x8xf32>
    %cst_19 = arith.constant 1.000000e+04 : f32
    %36 = vector.broadcast %cst_19 : f32 to vector<3x1x8xf32>
    %37 = arith.mulf %35, %36 : vector<3x1x8xf32>
    %cst_20 = arith.constant 0.000000e+00 : f32
    %38 = vector.broadcast %cst_20 : f32 to vector<24x32xf32>
    %c0_21 = arith.constant 0 : index
    %c0_22 = arith.constant 0 : index
    %39 = vector.load %arg7[%c0_21, %c0_22] : memref<32x32xf32, #tpu.memory_space<vmem>>, vector<32x32xf32>
    %40 = vector.extract_strided_slice %32 {offsets = [0, 0, 0], sizes = [3, 8, 16], strides = [1, 1, 1]} : vector<3x8x128xf32> to vector<3x8x16xf32>
    %41 = vector.extract_strided_slice %32 {offsets = [0, 0, 32], sizes = [3, 8, 16], strides = [1, 1, 1]} : vector<3x8x128xf32> to vector<3x8x16xf32>
    %42 = vector.extract_strided_slice %32 {offsets = [0, 0, 64], sizes = [3, 8, 16], strides = [1, 1, 1]} : vector<3x8x128xf32> to vector<3x8x16xf32>
    %43 = arith.truncf %40 : vector<3x8x16xf32> to vector<3x8x16xbf16>
    %44 = arith.truncf %41 : vector<3x8x16xf32> to vector<3x8x16xbf16>
    "tpu.trace_start"() <{level = 10 : i32, message = "nqd,nkd->nqk"}> : () -> ()
    %cst_23 = arith.constant dense<0.000000e+00> : vector<3x8x8xf32>
    %45 = tpu.matmul %43, %44, %cst_23 {dimension_numbers = #tpu.dot_dimension_numbers<[2], [2], [1], [1], [0, 0, 0, 1, 1, 1], [0], [0]>} : vector<3x8x16xbf16>, vector<3x8x16xbf16>, vector<3x8x8xf32> -> vector<3x8x8xf32>
    "tpu.trace_stop"() : () -> ()
    %cst_24 = arith.constant 2.500000e-01 : f32
    %46 = vector.broadcast %cst_24 : f32 to vector<3x8x8xf32>
    %47 = arith.mulf %45, %46 : vector<3x8x8xf32>
    %48 = vector.broadcast %37 : vector<3x1x8xf32> to vector<3x8x8xf32>
    %49 = arith.addf %47, %48 : vector<3x8x8xf32>
    %cst_25 = arith.constant dense<0xFF800000> : vector<3x8xf32>
    %50 = vector.multi_reduction <maximumf>, %49, %cst_25 [2] : vector<3x8x8xf32> to vector<3x8xf32>
    %51 = vector.shape_cast %50 : vector<3x8xf32> to vector<3x8x1xf32>
    %52 = vector.broadcast %51 : vector<3x8x1xf32> to vector<3x8x8xf32>
    %53 = arith.subf %49, %52 : vector<3x8x8xf32>
    %54 = math.exp %53 : vector<3x8x8xf32>
    %cst_26 = arith.constant dense<0.000000e+00> : vector<3x8xf32>
    %55 = vector.multi_reduction <add>, %54, %cst_26 [2] : vector<3x8x8xf32> to vector<3x8xf32>
    %56 = vector.shape_cast %55 : vector<3x8xf32> to vector<3x8x1xf32>
    %57 = tpu.reciprocal %56 {approx = true} : vector<3x8x1xf32> -> vector<3x8x1xf32>
    %58 = vector.broadcast %57 : vector<3x8x1xf32> to vector<3x8x8xf32>
    %59 = arith.mulf %54, %58 : vector<3x8x8xf32>
    %60 = arith.truncf %59 : vector<3x8x8xf32> to vector<3x8x8xbf16>
    %61 = arith.truncf %42 : vector<3x8x16xf32> to vector<3x8x16xbf16>
    "tpu.trace_start"() <{level = 10 : i32, message = "nqk,nkd->nqd"}> : () -> ()
    %cst_27 = arith.constant dense<0.000000e+00> : vector<3x8x16xf32>
    %62 = tpu.matmul %60, %61, %cst_27 {dimension_numbers = #tpu.dot_dimension_numbers<[2], [1], [1], [2], [0, 0, 0, 1, 1, 2], [0], [0]>} : vector<3x8x8xbf16>, vector<3x8x16xbf16>, vector<3x8x16xf32> -> vector<3x8x16xf32>
    "tpu.trace_stop"() : () -> ()
    %63 = vector.shape_cast %62 : vector<3x8x16xf32> to vector<24x16xf32>
    %64 = vector.extract_strided_slice %39 {offsets = [0, 0], sizes = [16, 32], strides = [1, 1]} : vector<32x32xf32> to vector<16x32xf32>
    %cst_28 = arith.constant dense<0.000000e+00> : vector<24x32xf32>
    %65 = tpu.matmul %63, %64, %cst_28 {dimension_numbers = #tpu.dot_dimension_numbers<[1], [0], [0], [1], [0, 0, 1, 1], [], []>} : vector<24x16xf32>, vector<16x32xf32>, vector<24x32xf32> -> vector<24x32xf32>
    %66 = arith.addf %38, %65 : vector<24x32xf32>
    %67 = vector.extract_strided_slice %32 {offsets = [0, 0, 16], sizes = [3, 8, 16], strides = [1, 1, 1]} : vector<3x8x128xf32> to vector<3x8x16xf32>
    %68 = vector.extract_strided_slice %32 {offsets = [0, 0, 48], sizes = [3, 8, 16], strides = [1, 1, 1]} : vector<3x8x128xf32> to vector<3x8x16xf32>
    %69 = vector.extract_strided_slice %32 {offsets = [0, 0, 80], sizes = [3, 8, 16], strides = [1, 1, 1]} : vector<3x8x128xf32> to vector<3x8x16xf32>
    %70 = arith.truncf %67 : vector<3x8x16xf32> to vector<3x8x16xbf16>
    %71 = arith.truncf %68 : vector<3x8x16xf32> to vector<3x8x16xbf16>
    "tpu.trace_start"() <{level = 10 : i32, message = "nqd,nkd->nqk"}> : () -> ()
    %cst_29 = arith.constant dense<0.000000e+00> : vector<3x8x8xf32>
    %72 = tpu.matmul %70, %71, %cst_29 {dimension_numbers = #tpu.dot_dimension_numbers<[2], [2], [1], [1], [0, 0, 0, 1, 1, 1], [0], [0]>} : vector<3x8x16xbf16>, vector<3x8x16xbf16>, vector<3x8x8xf32> -> vector<3x8x8xf32>
    "tpu.trace_stop"() : () -> ()
    %cst_30 = arith.constant 2.500000e-01 : f32
    %73 = vector.broadcast %cst_30 : f32 to vector<3x8x8xf32>
    %74 = arith.mulf %72, %73 : vector<3x8x8xf32>
    %75 = vector.broadcast %37 : vector<3x1x8xf32> to vector<3x8x8xf32>
    %76 = arith.addf %74, %75 : vector<3x8x8xf32>
    %cst_31 = arith.constant dense<0xFF800000> : vector<3x8xf32>
    %77 = vector.multi_reduction <maximumf>, %76, %cst_31 [2] : vector<3x8x8xf32> to vector<3x8xf32>
    %78 = vector.shape_cast %77 : vector<3x8xf32> to vector<3x8x1xf32>
    %79 = vector.broadcast %78 : vector<3x8x1xf32> to vector<3x8x8xf32>
    %80 = arith.subf %76, %79 : vector<3x8x8xf32>
    %81 = math.exp %80 : vector<3x8x8xf32>
    %cst_32 = arith.constant dense<0.000000e+00> : vector<3x8xf32>
    %82 = vector.multi_reduction <add>, %81, %cst_32 [2] : vector<3x8x8xf32> to vector<3x8xf32>
    %83 = vector.shape_cast %82 : vector<3x8xf32> to vector<3x8x1xf32>
    %84 = tpu.reciprocal %83 {approx = true} : vector<3x8x1xf32> -> vector<3x8x1xf32>
    %85 = vector.broadcast %84 : vector<3x8x1xf32> to vector<3x8x8xf32>
    %86 = arith.mulf %81, %85 : vector<3x8x8xf32>
    %87 = arith.truncf %86 : vector<3x8x8xf32> to vector<3x8x8xbf16>
    %88 = arith.truncf %69 : vector<3x8x16xf32> to vector<3x8x16xbf16>
    "tpu.trace_start"() <{level = 10 : i32, message = "nqk,nkd->nqd"}> : () -> ()
    %cst_33 = arith.constant dense<0.000000e+00> : vector<3x8x16xf32>
    %89 = tpu.matmul %87, %88, %cst_33 {dimension_numbers = #tpu.dot_dimension_numbers<[2], [1], [1], [2], [0, 0, 0, 1, 1, 2], [0], [0]>} : vector<3x8x8xbf16>, vector<3x8x16xbf16>, vector<3x8x16xf32> -> vector<3x8x16xf32>
    "tpu.trace_stop"() : () -> ()
    %90 = vector.shape_cast %89 : vector<3x8x16xf32> to vector<24x16xf32>
    %91 = vector.extract_strided_slice %39 {offsets = [16, 0], sizes = [16, 32], strides = [1, 1]} : vector<32x32xf32> to vector<16x32xf32>
    %cst_34 = arith.constant dense<0.000000e+00> : vector<24x32xf32>
    %92 = tpu.matmul %90, %91, %cst_34 {dimension_numbers = #tpu.dot_dimension_numbers<[1], [0], [0], [1], [0, 0, 1, 1], [], []>} : vector<24x16xf32>, vector<16x32xf32>, vector<24x32xf32> -> vector<24x32xf32>
    %93 = arith.addf %66, %92 : vector<24x32xf32>
    %94 = arith.addf %25, %93 : vector<24x32xf32>
    %c0_35 = arith.constant 0 : index
    %c0_36 = arith.constant 0 : index
    %95 = vector.load %arg8[%c0_35, %c0_36] : memref<1x32xf32, #tpu.memory_space<vmem>>, vector<1x32xf32>
    %96 = vector.broadcast %95 : vector<1x32xf32> to vector<24x32xf32>
    %97 = arith.addf %94, %96 : vector<24x32xf32>
    %c0_37 = arith.constant 0 : index
    %c0_38 = arith.constant 0 : index
    %98 = vector.load %arg9[%c0_37, %c0_38] : memref<1x32xf32, #tpu.memory_space<vmem>>, vector<1x32xf32>
    %c0_39 = arith.constant 0 : index
    %c0_40 = arith.constant 0 : index
    %99 = vector.load %arg10[%c0_39, %c0_40] : memref<1x32xf32, #tpu.memory_space<vmem>>, vector<1x32xf32>
    %cst_41 = arith.constant dense<0.000000e+00> : vector<24xf32>
    %100 = vector.multi_reduction <add>, %97, %cst_41 [1] : vector<24x32xf32> to vector<24xf32>
    %101 = vector.shape_cast %100 : vector<24xf32> to vector<24x1xf32>
    %cst_42 = arith.constant 3.200000e+01 : f32
    %102 = vector.broadcast %cst_42 : f32 to vector<24x1xf32>
    %103 = arith.divf %101, %102 : vector<24x1xf32>
    %104 = vector.broadcast %103 : vector<24x1xf32> to vector<24x32xf32>
    %105 = arith.subf %97, %104 : vector<24x32xf32>
    %106 = arith.mulf %105, %105 : vector<24x32xf32>
    %cst_43 = arith.constant dense<0.000000e+00> : vector<24xf32>
    %107 = vector.multi_reduction <add>, %106, %cst_43 [1] : vector<24x32xf32> to vector<24xf32>
    %108 = vector.shape_cast %107 : vector<24xf32> to vector<24x1xf32>
    %cst_44 = arith.constant 3.200000e+01 : f32
    %109 = vector.broadcast %cst_44 : f32 to vector<24x1xf32>
    %110 = arith.divf %108, %109 : vector<24x1xf32>
    %111 = vector.broadcast %103 : vector<24x1xf32> to vector<24x32xf32>
    %112 = arith.subf %97, %111 : vector<24x32xf32>
    %cst_45 = arith.constant 9.99999996E-13 : f32
    %113 = vector.broadcast %cst_45 : f32 to vector<24x1xf32>
    %114 = arith.addf %110, %113 : vector<24x1xf32>
    %115 = math.rsqrt %114 : vector<24x1xf32>
    %116 = vector.broadcast %115 : vector<24x1xf32> to vector<24x32xf32>
    %117 = arith.mulf %112, %116 : vector<24x32xf32>
    %118 = vector.broadcast %98 : vector<1x32xf32> to vector<24x32xf32>
    %119 = arith.mulf %117, %118 : vector<24x32xf32>
    %120 = vector.broadcast %99 : vector<1x32xf32> to vector<24x32xf32>
    %121 = arith.addf %119, %120 : vector<24x32xf32>
    %122 = arith.truncf %121 : vector<24x32xf32> to vector<24x32xbf16>
    %c0_46 = arith.constant 0 : index
    %c0_47 = arith.constant 0 : index
    %123 = vector.load %arg11[%c0_46, %c0_47] : memref<32x64xbf16, #tpu.memory_space<vmem>>, vector<32x64xbf16>
    %cst_48 = arith.constant dense<0.000000e+00> : vector<24x64xf32>
    %124 = tpu.matmul %122, %123, %cst_48 {dimension_numbers = #tpu.dot_dimension_numbers<[1], [0], [0], [1], [0, 0, 1, 1], [], []>} : vector<24x32xbf16>, vector<32x64xbf16>, vector<24x64xf32> -> vector<24x64xf32>
    %c0_49 = arith.constant 0 : index
    %c0_50 = arith.constant 0 : index
    %125 = vector.load %arg12[%c0_49, %c0_50] : memref<1x64xf32, #tpu.memory_space<vmem>>, vector<1x64xf32>
    %126 = vector.broadcast %125 : vector<1x64xf32> to vector<24x64xf32>
    %127 = arith.addf %124, %126 : vector<24x64xf32>
    %128 = arith.mulf %127, %127 : vector<24x64xf32>
    %129 = arith.mulf %127, %128 : vector<24x64xf32>
    %cst_51 = arith.constant 4.471500e-02 : f32
    %130 = vector.broadcast %cst_51 : f32 to vector<24x64xf32>
    %131 = arith.mulf %130, %129 : vector<24x64xf32>
    %132 = arith.addf %127, %131 : vector<24x64xf32>
    %cst_52 = arith.constant 0.797884583 : f32
    %133 = vector.broadcast %cst_52 : f32 to vector<24x64xf32>
    %134 = arith.mulf %133, %132 : vector<24x64xf32>
    %135 = math.tanh %134 : vector<24x64xf32>
    %cst_53 = arith.constant 1.000000e+00 : f32
    %136 = vector.broadcast %cst_53 : f32 to vector<24x64xf32>
    %137 = arith.addf %136, %135 : vector<24x64xf32>
    %cst_54 = arith.constant 5.000000e-01 : f32
    %138 = vector.broadcast %cst_54 : f32 to vector<24x64xf32>
    %139 = arith.mulf %138, %137 : vector<24x64xf32>
    %140 = arith.mulf %127, %139 : vector<24x64xf32>
    %141 = arith.truncf %140 : vector<24x64xf32> to vector<24x64xbf16>
    %c0_55 = arith.constant 0 : index
    %c0_56 = arith.constant 0 : index
    %142 = vector.load %arg13[%c0_55, %c0_56] : memref<64x32xbf16, #tpu.memory_space<vmem>>, vector<64x32xbf16>
    %cst_57 = arith.constant dense<0.000000e+00> : vector<24x32xf32>
    %143 = tpu.matmul %141, %142, %cst_57 {dimension_numbers = #tpu.dot_dimension_numbers<[1], [0], [0], [1], [0, 0, 1, 1], [], []>} : vector<24x64xbf16>, vector<64x32xbf16>, vector<24x32xf32> -> vector<24x32xf32>
    %c0_58 = arith.constant 0 : index
    %c0_59 = arith.constant 0 : index
    %144 = vector.load %arg14[%c0_58, %c0_59] : memref<1x32xf32, #tpu.memory_space<vmem>>, vector<1x32xf32>
    %145 = vector.broadcast %144 : vector<1x32xf32> to vector<24x32xf32>
    %146 = arith.addf %143, %145 : vector<24x32xf32>
    %147 = arith.addf %121, %146 : vector<24x32xf32>
    %c0_60 = arith.constant 0 : index
    %c0_61 = arith.constant 0 : index
    %148 = vector.load %arg15[%c0_60, %c0_61] : memref<1x32xf32, #tpu.memory_space<vmem>>, vector<1x32xf32>
    %c0_62 = arith.constant 0 : index
    %c0_63 = arith.constant 0 : index
    %149 = vector.load %arg16[%c0_62, %c0_63] : memref<1x32xf32, #tpu.memory_space<vmem>>, vector<1x32xf32>
    %cst_64 = arith.constant dense<0.000000e+00> : vector<24xf32>
    %150 = vector.multi_reduction <add>, %147, %cst_64 [1] : vector<24x32xf32> to vector<24xf32>
    %151 = vector.shape_cast %150 : vector<24xf32> to vector<24x1xf32>
    %cst_65 = arith.constant 3.200000e+01 : f32
    %152 = vector.broadcast %cst_65 : f32 to vector<24x1xf32>
    %153 = arith.divf %151, %152 : vector<24x1xf32>
    %154 = vector.broadcast %153 : vector<24x1xf32> to vector<24x32xf32>
    %155 = arith.subf %147, %154 : vector<24x32xf32>
    %156 = arith.mulf %155, %155 : vector<24x32xf32>
    %cst_66 = arith.constant dense<0.000000e+00> : vector<24xf32>
    %157 = vector.multi_reduction <add>, %156, %cst_66 [1] : vector<24x32xf32> to vector<24xf32>
    %158 = vector.shape_cast %157 : vector<24xf32> to vector<24x1xf32>
    %cst_67 = arith.constant 3.200000e+01 : f32
    %159 = vector.broadcast %cst_67 : f32 to vector<24x1xf32>
    %160 = arith.divf %158, %159 : vector<24x1xf32>
    %161 = vector.broadcast %153 : vector<24x1xf32> to vector<24x32xf32>
    %162 = arith.subf %147, %161 : vector<24x32xf32>
    %cst_68 = arith.constant 9.99999996E-13 : f32
    %163 = vector.broadcast %cst_68 : f32 to vector<24x1xf32>
    %164 = arith.addf %160, %163 : vector<24x1xf32>
    %165 = math.rsqrt %164 : vector<24x1xf32>
    %166 = vector.broadcast %165 : vector<24x1xf32> to vector<24x32xf32>
    %167 = arith.mulf %162, %166 : vector<24x32xf32>
    %168 = vector.broadcast %148 : vector<1x32xf32> to vector<24x32xf32>
    %169 = arith.mulf %167, %168 : vector<24x32xf32>
    %170 = vector.broadcast %149 : vector<1x32xf32> to vector<24x32xf32>
    %171 = arith.addf %169, %170 : vector<24x32xf32>
    %172 = vector.shape_cast %171 : vector<24x32xf32> to vector<3x8x32xf32>
    %c0_69 = arith.constant 0 : index
    %c0_70 = arith.constant 0 : index
    %c0_71 = arith.constant 0 : index
    %173 = vector.load %arg17[%c0_69, %c0_70, %c0_71] : memref<3x8x32xf32, #tpu.memory_space<vmem>>, vector<3x8x32xf32>
    tpu.vector_store %arg17[%c0_69, %c0_70, %c0_71], %172 {strides = array<i32>} : memref<3x8x32xf32, #tpu.memory_space<vmem>>, vector<3x8x32xf32>,
    return
  }
  func.func @transform_0(%arg0: i32) -> (i32, i32, i32) {
    %c0_i32 = arith.constant 0 : i32
    %c0_i32_0 = arith.constant 0 : i32
    %c0_i32_1 = arith.constant 0 : i32
    return %arg0, %c0_i32, %c0_i32_0 : i32, i32, i32
  }
  func.func @transform_1(%arg0: i32) -> (i32, i32, i32) {
    %c0_i32 = arith.constant 0 : i32
    %c0_i32_0 = arith.constant 0 : i32
    %c0_i32_1 = arith.constant 0 : i32
    return %arg0, %c0_i32, %c0_i32_0 : i32, i32, i32
  }
  func.func @transform_2(%arg0: i32) -> (i32, i32) {
    %c0_i32 = arith.constant 0 : i32
    %c0_i32_0 = arith.constant 0 : i32
    %c0_i32_1 = arith.constant 0 : i32
    return %c0_i32, %c0_i32_0 : i32, i32
  }
  func.func @transform_3(%arg0: i32) -> (i32, i32) {
    %c0_i32 = arith.constant 0 : i32
    %c0_i32_0 = arith.constant 0 : i32
    %c0_i32_1 = arith.constant 0 : i32
    return %c0_i32, %c0_i32_0 : i32, i32
  }
  func.func @transform_4(%arg0: i32) -> (i32, i32) {
    %c0_i32 = arith.constant 0 : i32
    %c0_i32_0 = arith.constant 0 : i32
    %c0_i32_1 = arith.constant 0 : i32
    return %c0_i32, %c0_i32_0 : i32, i32
  }
  func.func @transform_5(%arg0: i32) -> (i32, i32) {
    %c0_i32 = arith.constant 0 : i32
    %c0_i32_0 = arith.constant 0 : i32
    %c0_i32_1 = arith.constant 0 : i32
    return %c0_i32, %c0_i32_0 : i32, i32
  }
  func.func @transform_6(%arg0: i32) -> (i32, i32) {
    %c0_i32 = arith.constant 0 : i32
    %c0_i32_0 = arith.constant 0 : i32
    %c0_i32_1 = arith.constant 0 : i32
    return %c0_i32, %c0_i32_0 : i32, i32
  }
  func.func @transform_7(%arg0: i32) -> (i32, i32) {
    %c0_i32 = arith.constant 0 : i32
    %c0_i32_0 = arith.constant 0 : i32
    %c0_i32_1 = arith.constant 0 : i32
    return %c0_i32, %c0_i32_0 : i32, i32
  }
  func.func @transform_8(%arg0: i32) -> (i32, i32) {
    %c0_i32 = arith.constant 0 : i32
    %c0_i32_0 = arith.constant 0 : i32
    %c0_i32_1 = arith.constant 0 : i32
    return %c0_i32, %c0_i32_0 : i32, i32
  }
  func.func @transform_9(%arg0: i32) -> (i32, i32) {
    %c0_i32 = arith.constant 0 : i32
    %c0_i32_0 = arith.constant 0 : i32
    %c0_i32_1 = arith.constant 0 : i32
    return %c0_i32, %c0_i32_0 : i32, i32
  }
  func.func @transform_10(%arg0: i32) -> (i32, i32) {
    %c0_i32 = arith.constant 0 : i32
    %c0_i32_0 = arith.constant 0 : i32
    %c0_i32_1 = arith.constant 0 : i32
    return %c0_i32, %c0_i32_0 : i32, i32
  }
  func.func @transform_11(%arg0: i32) -> (i32, i32) {
    %c0_i32 = arith.constant 0 : i32
    %c0_i32_0 = arith.constant 0 : i32
    %c0_i32_1 = arith.constant 0 : i32
    return %c0_i32, %c0_i32_0 : i32, i32
  }
  func.func @transform_12(%arg0: i32) -> (i32, i32) {
    %c0_i32 = arith.constant 0 : i32
    %c0_i32_0 = arith.constant 0 : i32
    %c0_i32_1 = arith.constant 0 : i32
    return %c0_i32, %c0_i32_0 : i32, i32
  }
  func.func @transform_13(%arg0: i32) -> (i32, i32) {
    %c0_i32 = arith.constant 0 : i32
    %c0_i32_0 = arith.constant 0 : i32
    %c0_i32_1 = arith.constant 0 : i32
    return %c0_i32, %c0_i32_0 : i32, i32
  }
  func.func @transform_14(%arg0: i32) -> (i32, i32) {
    %c0_i32 = arith.constant 0 : i32
    %c0_i32_0 = arith.constant 0 : i32
    %c0_i32_1 = arith.constant 0 : i32
    return %c0_i32, %c0_i32_0 : i32, i32
  }
  func.func @transform_15(%arg0: i32) -> (i32, i32) {
    %c0_i32 = arith.constant 0 : i32
    %c0_i32_0 = arith.constant 0 : i32
    %c0_i32_1 = arith.constant 0 : i32
    return %c0_i32, %c0_i32_0 : i32, i32
  }
  func.func @transform_16(%arg0: i32) -> (i32, i32, i32) {
    %c0_i32 = arith.constant 0 : i32
    %c0_i32_0 = arith.constant 0 : i32
    %c0_i32_1 = arith.constant 0 : i32
    return %arg0, %c0_i32, %c0_i32_0 : i32, i32, i32
  }
}

</mosaic_0001>

<llo_original>
// kernel: tpu_custom_call.1
$region0: #{tpu_custom_call.1}
  #allocation0 [shape = 'u32[]', space=smem, size = 0x4, offset = 0x4, fixed_abs, tag = 'smem constant byte address 0x4 - core index']
  #allocation1 [shape = 'u32[144,128]{1,0:T(1,128)}', space=vmem, size = 0x12000, scoped, tag = 'internal scratch']
  %s0 = inlined_call_operand.vmem [shape: f32[6,8,32], index: 0, kind: input, shape index: {}]
  %s1 = inlined_call_operand.hbm [shape: f32[6,1,8], index: 1, kind: input, shape index: {}]
  %s2 = inlined_call_operand.vmem [shape: f32[1,32], index: 2, kind: input, shape index: {}]
  %s3 = inlined_call_operand.vmem [shape: f32[1,32], index: 3, kind: input, shape index: {}]
  %s4 = inlined_call_operand.hbm [shape: bf16[32,128], index: 4, kind: input, shape index: {}]
  %s5 = inlined_call_operand.hbm [shape: f32[1,128], index: 5, kind: input, shape index: {}]
  %s6 = inlined_call_operand.hbm [shape: f32[32,32], index: 6, kind: input, shape index: {}]
  %s7 = inlined_call_operand.hbm [shape: f32[1,32], index: 7, kind: input, shape index: {}]
  %s8 = inlined_call_operand.hbm [shape: f32[1,32], index: 8, kind: input, shape index: {}]
  %s9 = inlined_call_operand.hbm [shape: f32[1,32], index: 9, kind: input, shape index: {}]
  %s10 = inlined_call_operand.vmem [shape: bf16[32,64], index: 10, kind: input, shape index: {}]
  %s11 = inlined_call_operand.vmem [shape: f32[1,64], index: 11, kind: input, shape index: {}]
  %s12 = inlined_call_operand.vmem [shape: bf16[64,32], index: 12, kind: input, shape index: {}]
  %s13 = inlined_call_operand.vmem [shape: f32[1,32], index: 13, kind: input, shape index: {}]
  %s14 = inlined_call_operand.vmem [shape: f32[1,32], index: 14, kind: input, shape index: {}]
  %s15 = inlined_call_operand.vmem [shape: f32[1,32], index: 15, kind: input, shape index: {}]
  %s16 = inlined_call_operand.hbm [shape: f32[6,8,32], index: 16, kind: output, shape index: {}]
  %s17 = sld [smem:[#allocation0]]
  $region125: #{tpu_custom_call.1} parent=0
    _
  %s19 = ssub.s32 1, %s17
  %s20 = scalar_select 0, %s19, %s17
  $region1: #{tpu_custom_call.1} parent=0
    #allocation2 [shape = 'u8[3072]{0}', space=vmem, size = 0xc00, scoped, tag = 'input window, operand 1']
    #allocation3 [shape = 's32[2]{0}', space=sflag, size = 0x8, scoped, tag = 'scoped memory for tpu_custom_call.1']
    #allocation4 [shape = 's32[2]{0}', space=sflag, size = 0x8, scoped, tag = 'scoped memory for tpu_custom_call.1']
    #allocation5 [shape = 'u8[8192]{0}', space=vmem, size = 0x2000, scoped, tag = 'input window, operand 4, single buffered']
    #allocation6 [shape = 's32[1]{0}', space=sflag, size = 0x4, scoped, tag = 'scoped memory for tpu_custom_call.1']
    #allocation7 [shape = 'u8[512]{0}', space=vmem, size = 0x400, scoped, tag = 'input window, operand 5, single buffered']
    #allocation8 [shape = 'u8[16384]{0}', space=vmem, size = 0x4000, scoped, tag = 'input window, operand 6, single buffered']
    #allocation9 [shape = 's32[1]{0}', space=sflag, size = 0x4, scoped, tag = 'scoped memory for tpu_custom_call.1']
    #allocation10 [shape = 'u8[512]{0}', space=vmem, size = 0x400, scoped, tag = 'input window, operand 7, single buffered']
    #allocation11 [shape = 'u8[512]{0}', space=vmem, size = 0x400, scoped, tag = 'input window, operand 8, single buffered']
    #allocation12 [shape = 's32[1]{0}', space=sflag, size = 0x4, scoped, tag = 'scoped memory for tpu_custom_call.1']
    #allocation13 [shape = 'u8[512]{0}', space=vmem, size = 0x400, scoped, tag = 'input window, operand 9, single buffered']
    #allocation14 [shape = 'u8[24576]{0}', space=vmem, size = 0x6000, scoped, tag = 'output window, operand 0']
    %21 = vsyncpa [#allocation3], 0
    %s22 = scalar_lea.sflag [#allocation3], 1
    %23 = vsyncpa %s22, 0
    %24 = vsyncpa [#allocation6], 0
    %25 = vsyncpa [#allocation9], 0
    %26 = vsyncpa [#allocation12], 0
    %27 = vsyncpa [#allocation4], 0
    %s28 = scalar_lea.sflag [#allocation4], 1
    %29 = vsyncpa %s28, 0
    loop: start=0, step=1, limit=4
    $region2: #{tpu_custom_call.1} parent=1 // loop_pre_header
      _
    $region3: #{tpu_custom_call.1} parent=1 // loop_header
      %s31 = sphi 0, %s35
      %p32 = scmp.ge.s32.totalorder %s31, 4
      %s41 = sphi 0, %s43
      %s44 = sphi 0, %s41
      %s45 = sphi 0, %s44
      %s61 = sphi 0, %s45
      %s67 = sphi 0, %s69
      %s70 = sphi 0, %s67
      %s71 = sphi 0, %s70
      %s87 = sphi 0, %s71
      %s91 = sphi 0, %s91
      %s93 = sphi 0, %s91
      %s94 = sphi 0, %s93
      %s108 = sphi 0, %s94
      %s112 = sphi 0, %s112
      %s114 = sphi 0, %s112
      %s115 = sphi 0, %s114
      %s129 = sphi 0, %s115
      %s133 = sphi 0, %s133
      %s135 = sphi 0, %s133
      %s136 = sphi 0, %s135
      %s150 = sphi 0, %s136
      %s154 = sphi 0, %s154
      %s156 = sphi 0, %s154
      %s157 = sphi 0, %s156
      %s171 = sphi 0, %s157
      %s175 = sphi 0, %s175
      %s177 = sphi 0, %s175
      %s178 = sphi 0, %s177
      %s192 = sphi 0, %s178
      %s196 = sphi 0, %s196
      %s198 = sphi 0, %s196
      %s199 = sphi 0, %s198
      %s213 = sphi 0, %s199
      %s217 = sphi 0, %s217
      %s219 = sphi 0, %s217
      %s220 = sphi 0, %s219
      %s234 = sphi 0, %s220
      %s238 = sphi 0, %s238
      %s240 = sphi 0, %s238
      %s241 = sphi 0, %s240
      %s255 = sphi 0, %s241
      %s259 = sphi 0, %s259
      %s261 = sphi 0, %s259
      %s262 = sphi 0, %s261
      %s276 = sphi 0, %s262
      %s280 = sphi 0, %s280
      %s282 = sphi 0, %s280
      %s283 = sphi 0, %s282
      %s297 = sphi 0, %s283
      %s301 = sphi 0, %s301
      %s303 = sphi 0, %s301
      %s304 = sphi 0, %s303
      %s318 = sphi 0, %s304
      %s322 = sphi 0, %s322
      %s324 = sphi 0, %s322
      %s325 = sphi 0, %s324
      %s339 = sphi 0, %s325
      %s343 = sphi 0, %s343
      %s345 = sphi 0, %s343
      %s346 = sphi 0, %s345
      %s360 = sphi 0, %s346
      %s364 = sphi 0, %s364
      %s366 = sphi 0, %s364
      %s367 = sphi 0, %s366
      %s381 = sphi 0, %s367
      %s387 = sphi 0, %s389
      %s390 = sphi 0, %s387
      %s391 = sphi 0, %s390
      %s407 = sphi 0, %s391
    $region4: #{tpu_custom_call.1} parent=1 // loop_header_branch
      %34 = sbr.rel (%p32) target = $region8
    $region5: #{tpu_custom_call.1} parent=1 // loop_body
      %s36 = ssub.s32 %s31, 1
      %s37 = ssub.s32 %s31, 2
      %s38 = sadd.s32 %s31, 1
      %s39 = ssub.s32 %s31, %s38
      %p40 = scmp.eq.s32.totalorder %s39, 0
      %s42 = sadd.s32 %s41, 1
      %s43 = scalar_select %p40, %s41, %s42
      %p46 = pneg %p40
      %p47 = scmp.eq.s32.totalorder %s31, 1
      %p48 = por %p46, %p47
      %p49 = scmp.ne.s32.totalorder %s41, %s44
      %p50 = scmp.eq.s32.totalorder %s31, 0
      %p51 = por %p49, %p50
      %p52 = scmp.ne.s32.totalorder %s41, %s44
      %p53 = scmp.eq.s32.totalorder %s36, 1
      %p54 = por %p52, %p53
      %p55 = scmp.ne.s32.totalorder %s44, %s45
      %p56 = scmp.eq.s32.totalorder %s36, 0
      %p57 = por %p55, %p56
      %p58 = scmp.ne.s32.totalorder %s44, %s45
      %p59 = scmp.eq.s32.totalorder %s37, 1
      %p60 = por %p58, %p59
      %p62 = scmp.ne.s32.totalorder %s45, %s61
      %p63 = scmp.eq.s32.totalorder %s37, 0
      %p64 = por %p62, %p63
      %s65 = ssub.s32 %s31, %s38
      %p66 = scmp.eq.s32.totalorder %s65, 0
      %s68 = sadd.s32 %s67, 1
      %s69 = scalar_select %p66, %s67, %s68
      %p72 = pneg %p66
      %p73 = scmp.eq.s32.totalorder %s31, 1
      %p74 = por %p72, %p73
      %p75 = scmp.ne.s32.totalorder %s67, %s70
      %p76 = scmp.eq.s32.totalorder %s31, 0
      %p77 = por %p75, %p76
      %p78 = scmp.ne.s32.totalorder %s67, %s70
      %p79 = scmp.eq.s32.totalorder %s36, 1
      %p80 = por %p78, %p79
      %p81 = scmp.ne.s32.totalorder %s70, %s71
      %p82 = scmp.eq.s32.totalorder %s36, 0
      %p83 = por %p81, %p82
      %p84 = scmp.ne.s32.totalorder %s70, %s71
      %p85 = scmp.eq.s32.totalorder %s37, 1
      %p86 = por %p84, %p85
      %p88 = scmp.ne.s32.totalorder %s71, %s87
      %p89 = scmp.eq.s32.totalorder %s37, 0
      %p90 = por %p88, %p89
      %s92 = sadd.s32 %s91, 1
      %p95 = scmp.eq.s32.totalorder %s31, 1
      %p96 = scmp.ne.s32.totalorder %s91, %s93
      %p97 = scmp.eq.s32.totalorder %s31, 0
      %p98 = por %p96, %p97
      %p99 = scmp.ne.s32.totalorder %s91, %s93
      %p100 = scmp.eq.s32.totalorder %s36, 1
      %p101 = por %p99, %p100
      %p102 = scmp.ne.s32.totalorder %s93, %s94
      %p103 = scmp.eq.s32.totalorder %s36, 0
      %p104 = por %p102, %p103
      %p105 = scmp.ne.s32.totalorder %s93, %s94
      %p106 = scmp.eq.s32.totalorder %s37, 1
      %p107 = por %p105, %p106
      %p109 = scmp.ne.s32.totalorder %s94, %s108
      %p110 = scmp.eq.s32.totalorder %s37, 0
      %p111 = por %p109, %p110
      %s113 = sadd.s32 %s112, 1
      %p116 = scmp.eq.s32.totalorder %s31, 1
      %p117 = scmp.ne.s32.totalorder %s112, %s114
      %p118 = scmp.eq.s32.totalorder %s31, 0
      %p119 = por %p117, %p118
      %p120 = scmp.ne.s32.totalorder %s112, %s114
      %p121 = scmp.eq.s32.totalorder %s36, 1
      %p122 = por %p120, %p121
      %p123 = scmp.ne.s32.totalorder %s114, %s115
      %p124 = scmp.eq.s32.totalorder %s36, 0
      %p125 = por %p123, %p124
      %p126 = scmp.ne.s32.totalorder %s114, %s115
      %p127 = scmp.eq.s32.totalorder %s37, 1
      %p128 = por %p126, %p127
      %p130 = scmp.ne.s32.totalorder %s115, %s129
      %p131 = scmp.eq.s32.totalorder %s37, 0
      %p132 = por %p130, %p131
      %s134 = sadd.s32 %s133, 1
      %p137 = scmp.eq.s32.totalorder %s31, 1
      %p138 = scmp.ne.s32.totalorder %s133, %s135
      %p139 = scmp.eq.s32.totalorder %s31, 0
      %p140 = por %p138, %p139
      %p141 = scmp.ne.s32.totalorder %s133, %s135
      %p142 = scmp.eq.s32.totalorder %s36, 1
      %p143 = por %p141, %p142
      %p144 = scmp.ne.s32.totalorder %s135, %s136
      %p145 = scmp.eq.s32.totalorder %s36, 0
      %p146 = por %p144, %p145
      %p147 = scmp.ne.s32.totalorder %s135, %s136
      %p148 = scmp.eq.s32.totalorder %s37, 1
      %p149 = por %p147, %p148
      %p151 = scmp.ne.s32.totalorder %s136, %s150
      %p152 = scmp.eq.s32.totalorder %s37, 0
      %p153 = por %p151, %p152
      %s155 = sadd.s32 %s154, 1
      %p158 = scmp.eq.s32.totalorder %s31, 1
      %p159 = scmp.ne.s32.totalorder %s154, %s156
      %p160 = scmp.eq.s32.totalorder %s31, 0
      %p161 = por %p159, %p160
      %p162 = scmp.ne.s32.totalorder %s154, %s156
      %p163 = scmp.eq.s32.totalorder %s36, 1
      %p164 = por %p162, %p163
      %p165 = scmp.ne.s32.totalorder %s156, %s157
      %p166 = scmp.eq.s32.totalorder %s36, 0
      %p167 = por %p165, %p166
      %p168 = scmp.ne.s32.totalorder %s156, %s157
      %p169 = scmp.eq.s32.totalorder %s37, 1
      %p170 = por %p168, %p169
      %p172 = scmp.ne.s32.totalorder %s157, %s171
      %p173 = scmp.eq.s32.totalorder %s37, 0
      %p174 = por %p172, %p173
      %s176 = sadd.s32 %s175, 1
      %p179 = scmp.eq.s32.totalorder %s31, 1
      %p180 = scmp.ne.s32.totalorder %s175, %s177
      %p181 = scmp.eq.s32.totalorder %s31, 0
      %p182 = por %p180, %p181
      %p183 = scmp.ne.s32.totalorder %s175, %s177
      %p184 = scmp.eq.s32.totalorder %s36, 1
      %p185 = por %p183, %p184
      %p186 = scmp.ne.s32.totalorder %s177, %s178
      %p187 = scmp.eq.s32.totalorder %s36, 0
      %p188 = por %p186, %p187
      %p189 = scmp.ne.s32.totalorder %s177, %s178
      %p190 = scmp.eq.s32.totalorder %s37, 1
      %p191 = por %p189, %p190
      %p193 = scmp.ne.s32.totalorder %s178, %s192
      %p194 = scmp.eq.s32.totalorder %s37, 0
      %p195 = por %p193, %p194
      %s197 = sadd.s32 %s196, 1
      %p200 = scmp.eq.s32.totalorder %s31, 1
      %p201 = scmp.ne.s32.totalorder %s196, %s198
      %p202 = scmp.eq.s32.totalorder %s31, 0
      %p203 = por %p201, %p202
      %p204 = scmp.ne.s32.totalorder %s196, %s198
      %p205 = scmp.eq.s32.totalorder %s36, 1
      %p206 = por %p204, %p205
      %p207 = scmp.ne.s32.totalorder %s198, %s199
      %p208 = scmp.eq.s32.totalorder %s36, 0
      %p209 = por %p207, %p208
      %p210 = scmp.ne.s32.totalorder %s198, %s199
      %p211 = scmp.eq.s32.totalorder %s37, 1
      %p212 = por %p210, %p211
      %p214 = scmp.ne.s32.totalorder %s199, %s213
      %p215 = scmp.eq.s32.totalorder %s37, 0
      %p216 = por %p214, %p215
      %s218 = sadd.s32 %s217, 1
      %p221 = scmp.eq.s32.totalorder %s31, 1
      %p222 = scmp.ne.s32.totalorder %s217, %s219
      %p223 = scmp.eq.s32.totalorder %s31, 0
      %p224 = por %p222, %p223
      %p225 = scmp.ne.s32.totalorder %s217, %s219
      %p226 = scmp.eq.s32.totalorder %s36, 1
      %p227 = por %p225, %p226
      %p228 = scmp.ne.s32.totalorder %s219, %s220
      %p229 = scmp.eq.s32.totalorder %s36, 0
      %p230 = por %p228, %p229
      %p231 = scmp.ne.s32.totalorder %s219, %s220
      %p232 = scmp.eq.s32.totalorder %s37, 1
      %p233 = por %p231, %p232
      %p235 = scmp.ne.s32.totalorder %s220, %s234
      %p236 = scmp.eq.s32.totalorder %s37, 0
      %p237 = por %p235, %p236
      %s239 = sadd.s32 %s238, 1
      %p242 = scmp.eq.s32.totalorder %s31, 1
      %p243 = scmp.ne.s32.totalorder %s238, %s240
      %p244 = scmp.eq.s32.totalorder %s31, 0
      %p245 = por %p243, %p244
      %p246 = scmp.ne.s32.totalorder %s238, %s240
      %p247 = scmp.eq.s32.totalorder %s36, 1
      %p248 = por %p246, %p247
      %p249 = scmp.ne.s32.totalorder %s240, %s241
      %p250 = scmp.eq.s32.totalorder %s36, 0
      %p251 = por %p249, %p250
      %p252 = scmp.ne.s32.totalorder %s240, %s241
      %p253 = scmp.eq.s32.totalorder %s37, 1
      %p254 = por %p252, %p253
      %p256 = scmp.ne.s32.totalorder %s241, %s255
      %p257 = scmp.eq.s32.totalorder %s37, 0
      %p258 = por %p256, %p257
      %s260 = sadd.s32 %s259, 1
      %p263 = scmp.eq.s32.totalorder %s31, 1
      %p264 = scmp.ne.s32.totalorder %s259, %s261
      %p265 = scmp.eq.s32.totalorder %s31, 0
      %p266 = por %p264, %p265
      %p267 = scmp.ne.s32.totalorder %s259, %s261
      %p268 = scmp.eq.s32.totalorder %s36, 1
      %p269 = por %p267, %p268
      %p270 = scmp.ne.s32.totalorder %s261, %s262
      %p271 = scmp.eq.s32.totalorder %s36, 0
      %p272 = por %p270, %p271
      %p273 = scmp.ne.s32.totalorder %s261, %s262
      %p274 = scmp.eq.s32.totalorder %s37, 1
      %p275 = por %p273, %p274
      %p277 = scmp.ne.s32.totalorder %s262, %s276
      %p278 = scmp.eq.s32.totalorder %s37, 0
      %p279 = por %p277, %p278
      %s281 = sadd.s32 %s280, 1
      %p284 = scmp.eq.s32.totalorder %s31, 1
      %p285 = scmp.ne.s32.totalorder %s280, %s282
      %p286 = scmp.eq.s32.totalorder %s31, 0
      %p287 = por %p285, %p286
      %p288 = scmp.ne.s32.totalorder %s280, %s282
      %p289 = scmp.eq.s32.totalorder %s36, 1
      %p290 = por %p288, %p289
      %p291 = scmp.ne.s32.totalorder %s282, %s283
      %p292 = scmp.eq.s32.totalorder %s36, 0
      %p293 = por %p291, %p292
      %p294 = scmp.ne.s32.totalorder %s282, %s283
      %p295 = scmp.eq.s32.totalorder %s37, 1
      %p296 = por %p294, %p295
      %p298 = scmp.ne.s32.totalorder %s283, %s297
      %p299 = scmp.eq.s32.totalorder %s37, 0
      %p300 = por %p298, %p299
      %s302 = sadd.s32 %s301, 1
      %p305 = scmp.eq.s32.totalorder %s31, 1
      %p306 = scmp.ne.s32.totalorder %s301, %s303
      %p307 = scmp.eq.s32.totalorder %s31, 0
      %p308 = por %p306, %p307
      %p309 = scmp.ne.s32.totalorder %s301, %s303
      %p310 = scmp.eq.s32.totalorder %s36, 1
      %p311 = por %p309, %p310
      %p312 = scmp.ne.s32.totalorder %s303, %s304
      %p313 = scmp.eq.s32.totalorder %s36, 0
      %p314 = por %p312, %p313
      %p315 = scmp.ne.s32.totalorder %s303, %s304
      %p316 = scmp.eq.s32.totalorder %s37, 1
      %p317 = por %p315, %p316
      %p319 = scmp.ne.s32.totalorder %s304, %s318
      %p320 = scmp.eq.s32.totalorder %s37, 0
      %p321 = por %p319, %p320
      %s323 = sadd.s32 %s322, 1
      %p326 = scmp.eq.s32.totalorder %s31, 1
      %p327 = scmp.ne.s32.totalorder %s322, %s324
      %p328 = scmp.eq.s32.totalorder %s31, 0
      %p329 = por %p327, %p328
      %p330 = scmp.ne.s32.totalorder %s322, %s324
      %p331 = scmp.eq.s32.totalorder %s36, 1
      %p332 = por %p330, %p331
      %p333 = scmp.ne.s32.totalorder %s324, %s325
      %p334 = scmp.eq.s32.totalorder %s36, 0
      %p335 = por %p333, %p334
      %p336 = scmp.ne.s32.totalorder %s324, %s325
      %p337 = scmp.eq.s32.totalorder %s37, 1
      %p338 = por %p336, %p337
      %p340 = scmp.ne.s32.totalorder %s325, %s339
      %p341 = scmp.eq.s32.totalorder %s37, 0
      %p342 = por %p340, %p341
      %s344 = sadd.s32 %s343, 1
      %p347 = scmp.eq.s32.totalorder %s31, 1
      %p348 = scmp.ne.s32.totalorder %s343, %s345
      %p349 = scmp.eq.s32.totalorder %s31, 0
      %p350 = por %p348, %p349
      %p351 = scmp.ne.s32.totalorder %s343, %s345
      %p352 = scmp.eq.s32.totalorder %s36, 1
      %p353 = por %p351, %p352
      %p354 = scmp.ne.s32.totalorder %s345, %s346
      %p355 = scmp.eq.s32.totalorder %s36, 0
      %p356 = por %p354, %p355
      %p357 = scmp.ne.s32.totalorder %s345, %s346
      %p358 = scmp.eq.s32.totalorder %s37, 1
      %p359 = por %p357, %p358
      %p361 = scmp.ne.s32.totalorder %s346, %s360
      %p362 = scmp.eq.s32.totalorder %s37, 0
      %p363 = por %p361, %p362
      %s365 = sadd.s32 %s364, 1
      %p368 = scmp.eq.s32.totalorder %s31, 1
      %p369 = scmp.ne.s32.totalorder %s364, %s366
      %p370 = scmp.eq.s32.totalorder %s31, 0
      %p371 = por %p369, %p370
      %p372 = scmp.ne.s32.totalorder %s364, %s366
      %p373 = scmp.eq.s32.totalorder %s36, 1
      %p374 = por %p372, %p373
      %p375 = scmp.ne.s32.totalorder %s366, %s367
      %p376 = scmp.eq.s32.totalorder %s36, 0
      %p377 = por %p375, %p376
      %p378 = scmp.ne.s32.totalorder %s366, %s367
      %p379 = scmp.eq.s32.totalorder %s37, 1
      %p380 = por %p378, %p379
      %p382 = scmp.ne.s32.totalorder %s367, %s381
      %p383 = scmp.eq.s32.totalorder %s37, 0
      %p384 = por %p382, %p383
      %s385 = ssub.s32 %s31, %s38
      %p386 = scmp.eq.s32.totalorder %s385, 0
      %s388 = sadd.s32 %s387, 1
      %s389 = scalar_select %p386, %s387, %s388
      %p392 = pneg %p386
      %p393 = scmp.eq.s32.totalorder %s31, 1
      %p394 = por %p392, %p393
      %p395 = scmp.ne.s32.totalorder %s387, %s390
      %p396 = scmp.eq.s32.totalorder %s31, 0
      %p397 = por %p395, %p396
      %p398 = scmp.ne.s32.totalorder %s387, %s390
      %p399 = scmp.eq.s32.totalorder %s36, 1
      %p400 = por %p398, %p399
      %p401 = scmp.ne.s32.totalorder %s390, %s391
      %p402 = scmp.eq.s32.totalorder %s36, 0
      %p403 = por %p401, %p402
      %p404 = scmp.ne.s32.totalorder %s390, %s391
      %p405 = scmp.eq.s32.totalorder %s37, 1
      %p406 = por %p404, %p405
      %p408 = scmp.ne.s32.totalorder %s391, %s407
      %p409 = scmp.eq.s32.totalorder %s37, 0
      %p410 = por %p408, %p409
      %p411 = scmp.le.s32.totalorder 1, %s31
      %p412 = scmp.lt.s32.totalorder %s31, 3
      %p413 = pnand %p411, %p412
      %p414 = pneg %p413
      // Predicated region
      $region9: #{tpu_custom_call.1} parent=5 // pred_check
        _
      $region10: #{tpu_custom_call.1} parent=5 // pred_check_branch
        %416 = sbr.rel (%p413) target = $region12
      $region11: #{tpu_custom_call.1} parent=5 // pred_region
        %s417 = ssub.s32 %s31, 1
        // Predicated region
        $region13: #{tpu_custom_call.1} parent=11 // pred_check
          %p418 = pneg %p104
        $region14: #{tpu_custom_call.1} parent=11 // pred_check_branch
          %420 = sbr.rel (%p418) target = $region16
        $region15: #{tpu_custom_call.1} parent=11 // pred_region
          _
        $region16: #{tpu_custom_call.1} parent=11 // pred_fallthru
          _
        // Predicated region
        $region17: #{tpu_custom_call.1} parent=11 // pred_check
          %p421 = pneg %p125
        $region18: #{tpu_custom_call.1} parent=11 // pred_check_branch
          %423 = sbr.rel (%p421) target = $region20
        $region19: #{tpu_custom_call.1} parent=11 // pred_region
          _
        $region20: #{tpu_custom_call.1} parent=11 // pred_fallthru
          _
        // Predicated region
        $region21: #{tpu_custom_call.1} parent=11 // pred_check
          %p424 = pneg %p146
        $region22: #{tpu_custom_call.1} parent=11 // pred_check_branch
          %426 = sbr.rel (%p424) target = $region24
        $region23: #{tpu_custom_call.1} parent=11 // pred_region
          %s428 = ssub.s32 256, 256
          %429 = vsyncadd [#allocation6], %s428
          %s430 = sshll.u32 [#allocation5], 4
          %s431 = int_to_ptr.vmem [resolvable:$true] %s430
          %436 = dma.hbm_to_vmem [thread:$0]  %s4, 256, %s431, [#allocation6], 64, 64, 4
        $region24: #{tpu_custom_call.1} parent=11 // pred_fallthru
          _
        // Predicated region
        $region25: #{tpu_custom_call.1} parent=11 // pred_check
          %p437 = pneg %p167
        $region26: #{tpu_custom_call.1} parent=11 // pred_check_branch
          %439 = sbr.rel (%p437) target = $region28
        $region27: #{tpu_custom_call.1} parent=11 // pred_region
          %s441 = ssub.s32 16, 16
          %442 = vsyncadd [#allocation6], %s441
          %s444 = sshll.u32 [#allocation7], 4
          %s445 = int_to_ptr.vmem [resolvable:$true] %s444
          %447 = dma.hbm_to_vmem [thread:$0]  %s5, 16, %s445, [#allocation6]
        $region28: #{tpu_custom_call.1} parent=11 // pred_fallthru
          _
        // Predicated region
        $region29: #{tpu_custom_call.1} parent=11 // pred_check
          %p448 = pneg %p188
        $region30: #{tpu_custom_call.1} parent=11 // pred_check_branch
          %450 = sbr.rel (%p448) target = $region32
        $region31: #{tpu_custom_call.1} parent=11 // pred_region
          %s452 = ssub.s32 512, 512
          %453 = vsyncadd [#allocation9], %s452
          %s454 = sshll.u32 [#allocation8], 4
          %s455 = int_to_ptr.vmem [resolvable:$true] %s454
          %460 = dma.hbm_to_vmem [thread:$0]  %s6, 512, %s455, [#allocation9], 128, 128, 8
        $region32: #{tpu_custom_call.1} parent=11 // pred_fallthru
          _
        // Predicated region
        $region33: #{tpu_custom_call.1} parent=11 // pred_check
          %p461 = pneg %p209
        $region34: #{tpu_custom_call.1} parent=11 // pred_check_branch
          %463 = sbr.rel (%p461) target = $region36
        $region35: #{tpu_custom_call.1} parent=11 // pred_region
          %s465 = ssub.s32 16, 16
          %466 = vsyncadd [#allocation9], %s465
          %s468 = sshll.u32 [#allocation10], 4
          %s469 = int_to_ptr.vmem [resolvable:$true] %s468
          %471 = dma.hbm_to_vmem [thread:$0]  %s7, 16, %s469, [#allocation9]
        $region36: #{tpu_custom_call.1} parent=11 // pred_fallthru
          _
        // Predicated region
        $region37: #{tpu_custom_call.1} parent=11 // pred_check
          %p472 = pneg %p230
        $region38: #{tpu_custom_call.1} parent=11 // pred_check_branch
          %474 = sbr.rel (%p472) target = $region40
        $region39: #{tpu_custom_call.1} parent=11 // pred_region
          %s476 = ssub.s32 16, 16
          %477 = vsyncadd [#allocation12], %s476
          %s479 = sshll.u32 [#allocation11], 4
          %s480 = int_to_ptr.vmem [resolvable:$true] %s479
          %482 = dma.hbm_to_vmem [thread:$0]  %s8, 16, %s480, [#allocation12]
        $region40: #{tpu_custom_call.1} parent=11 // pred_fallthru
          _
        // Predicated region
        $region41: #{tpu_custom_call.1} parent=11 // pred_check
          %p483 = pneg %p251
        $region42: #{tpu_custom_call.1} parent=11 // pred_check_branch
          %485 = sbr.rel (%p483) target = $region44
        $region43: #{tpu_custom_call.1} parent=11 // pred_region
          %s487 = ssub.s32 16, 16
          %488 = vsyncadd [#allocation12], %s487
          %s490 = sshll.u32 [#allocation13], 4
          %s491 = int_to_ptr.vmem [resolvable:$true] %s490
          %493 = dma.hbm_to_vmem [thread:$0]  %s9, 16, %s491, [#allocation12]
        $region44: #{tpu_custom_call.1} parent=11 // pred_fallthru
          _
        // Predicated region
        $region45: #{tpu_custom_call.1} parent=11 // pred_check
          %p494 = pneg %p272
        $region46: #{tpu_custom_call.1} parent=11 // pred_check_branch
          %496 = sbr.rel (%p494) target = $region48
        $region47: #{tpu_custom_call.1} parent=11 // pred_region
          _
        $region48: #{tpu_custom_call.1} parent=11 // pred_fallthru
          _
        // Predicated region
        $region49: #{tpu_custom_call.1} parent=11 // pred_check
          %p497 = pneg %p293
        $region50: #{tpu_custom_call.1} parent=11 // pred_check_branch
          %499 = sbr.rel (%p497) target = $region52
        $region51: #{tpu_custom_call.1} parent=11 // pred_region
          _
        $region52: #{tpu_custom_call.1} parent=11 // pred_fallthru
          _
        // Predicated region
        $region53: #{tpu_custom_call.1} parent=11 // pred_check
          %p500 = pneg %p314
        $region54: #{tpu_custom_call.1} parent=11 // pred_check_branch
          %502 = sbr.rel (%p500) target = $region56
        $region55: #{tpu_custom_call.1} parent=11 // pred_region
          _
        $region56: #{tpu_custom_call.1} parent=11 // pred_fallthru
          _
        // Predicated region
        $region57: #{tpu_custom_call.1} parent=11 // pred_check
          %p503 = pneg %p335
        $region58: #{tpu_custom_call.1} parent=11 // pred_check_branch
          %505 = sbr.rel (%p503) target = $region60
        $region59: #{tpu_custom_call.1} parent=11 // pred_region
          _
        $region60: #{tpu_custom_call.1} parent=11 // pred_fallthru
          _
        // Predicated region
        $region61: #{tpu_custom_call.1} parent=11 // pred_check
          %p506 = pneg %p356
        $region62: #{tpu_custom_call.1} parent=11 // pred_check_branch
          %508 = sbr.rel (%p506) target = $region64
        $region63: #{tpu_custom_call.1} parent=11 // pred_region
          _
        $region64: #{tpu_custom_call.1} parent=11 // pred_fallthru
          _
        // Predicated region
        $region65: #{tpu_custom_call.1} parent=11 // pred_check
          %p509 = pneg %p377
        $region66: #{tpu_custom_call.1} parent=11 // pred_check_branch
          %511 = sbr.rel (%p509) target = $region68
        $region67: #{tpu_custom_call.1} parent=11 // pred_region
          _
        $region68: #{tpu_custom_call.1} parent=11 // pred_fallthru
          _
      $region12: #{tpu_custom_call.1} parent=5 // pred_fallthru
        _
      %p512 = scmp.lt.s32.totalorder %s31, 2
      // Predicated region
      $region69: #{tpu_custom_call.1} parent=5 // pred_check
        %p513 = pneg %p512
      $region70: #{tpu_custom_call.1} parent=5 // pred_check_branch
        %515 = sbr.rel (%p513) target = $region72
      $region71: #{tpu_custom_call.1} parent=5 // pred_region
        // Predicated region
        $region73: #{tpu_custom_call.1} parent=71 // pred_check
          %p516 = pneg %p51
        $region74: #{tpu_custom_call.1} parent=71 // pred_check_branch
          %518 = sbr.rel (%p516) target = $region76
        $region75: #{tpu_custom_call.1} parent=71 // pred_region
          %s519 = smul.u32 3, %s31
          %p520 = scmp.lt.s32.totalorder %s519, 5
          %s521 = scalar_select %p520, %s519, 5
          %s522 = smul.addr %s521, 8
          %s523 = scalar_lea.vmem %s0, %s522
          %s524 = smul.u32 3, %s31
        $region76: #{tpu_custom_call.1} parent=71 // pred_fallthru
          _
        // Predicated region
        $region77: #{tpu_custom_call.1} parent=71 // pred_check
          %p525 = pneg %p77
        $region78: #{tpu_custom_call.1} parent=71 // pred_check_branch
          %527 = sbr.rel (%p525) target = $region80
        $region79: #{tpu_custom_call.1} parent=71 // pred_region
          %s528 = sand.u32 %s67, 1
          %s529 = scalar_lea.sflag [#allocation3], %s528
          %s530 = sand.u32 %s67, 1
          %s531 = smul.addr %s530, 3
          %s532 = scalar_lea.vmem [#allocation2], %s531
          %s533 = smul.u32 3, %s31
          %s535 = ssub.s32 48, 48
          %536 = vsyncadd %s529, %s535
          %s537 = smul.addr %s533, 16
          %s538 = scalar_lea.hbm %s1, %s537
          %s539 = sshll.u32 %s532, 4
          %s540 = int_to_ptr.vmem [resolvable:$true] %s539
          %545 = dma.hbm_to_vmem [thread:$0]  %s538, 48, %s540, %s529, 16, 16, 1
        $region80: #{tpu_custom_call.1} parent=71 // pred_fallthru
          _
      $region72: #{tpu_custom_call.1} parent=5 // pred_fallthru
        _
      %p546 = scmp.le.s32.totalorder 1, %s31
      %p547 = scmp.lt.s32.totalorder %s31, 3
      %p548 = pnand %p546, %p547
      %p549 = pneg %p548
      // Predicated region
      $region81: #{tpu_custom_call.1} parent=5 // pred_check
        _
      $region82: #{tpu_custom_call.1} parent=5 // pred_check_branch
        %551 = sbr.rel (%p548) target = $region84
      $region83: #{tpu_custom_call.1} parent=5 // pred_region
        %s552 = ssub.s32 %s31, 1
        %s553 = sand.u32 %s70, 1
        %s554 = scalar_lea.sflag [#allocation3], %s553
        %s555 = sand.u32 %s70, 1
        %s556 = smul.addr %s555, 3
        %s557 = scalar_lea.vmem [#allocation2], %s556
        // Predicated region
        $region85: #{tpu_custom_call.1} parent=83 // pred_check
          %p558 = pneg %p83
        $region86: #{tpu_custom_call.1} parent=83 // pred_check_branch
          %560 = sbr.rel (%p558) target = $region88
        $region87: #{tpu_custom_call.1} parent=83 // pred_region
          %561 = dma.done %s554, 48
        $region88: #{tpu_custom_call.1} parent=83 // pred_fallthru
          _
        // Predicated region
        $region89: #{tpu_custom_call.1} parent=83 // pred_check
          %p562 = pneg %p146
        $region90: #{tpu_custom_call.1} parent=83 // pred_check_branch
          %564 = sbr.rel (%p562) target = $region92
        $region91: #{tpu_custom_call.1} parent=83 // pred_region
          %565 = dma.done [#allocation6], 256
        $region92: #{tpu_custom_call.1} parent=83 // pred_fallthru
          _
        // Predicated region
        $region93: #{tpu_custom_call.1} parent=83 // pred_check
          %p566 = pneg %p167
        $region94: #{tpu_custom_call.1} parent=83 // pred_check_branch
          %568 = sbr.rel (%p566) target = $region96
        $region95: #{tpu_custom_call.1} parent=83 // pred_region
          %569 = dma.done [#allocation6], 16
        $region96: #{tpu_custom_call.1} parent=83 // pred_fallthru
          _
        // Predicated region
        $region97: #{tpu_custom_call.1} parent=83 // pred_check
          %p570 = pneg %p188
        $region98: #{tpu_custom_call.1} parent=83 // pred_check_branch
          %572 = sbr.rel (%p570) target = $region100
        $region99: #{tpu_custom_call.1} parent=83 // pred_region
          %573 = dma.done [#allocation9], 512
        $region100: #{tpu_custom_call.1} parent=83 // pred_fallthru
          _
        // Predicated region
        $region101: #{tpu_custom_call.1} parent=83 // pred_check
          %p574 = pneg %p209
        $region102: #{tpu_custom_call.1} parent=83 // pred_check_branch
          %576 = sbr.rel (%p574) target = $region104
        $region103: #{tpu_custom_call.1} parent=83 // pred_region
          %577 = dma.done [#allocation9], 16
        $region104: #{tpu_custom_call.1} parent=83 // pred_fallthru
          _
        // Predicated region
        $region105: #{tpu_custom_call.1} parent=83 // pred_check
          %p578 = pneg %p230
        $region106: #{tpu_custom_call.1} parent=83 // pred_check_branch
          %580 = sbr.rel (%p578) target = $region108
        $region107: #{tpu_custom_call.1} parent=83 // pred_region
          %581 = dma.done [#allocation12], 16
        $region108: #{tpu_custom_call.1} parent=83 // pred_fallthru
          _
        // Predicated region
        $region109: #{tpu_custom_call.1} parent=83 // pred_check
          %p582 = pneg %p251
        $region110: #{tpu_custom_call.1} parent=83 // pred_check_branch
          %584 = sbr.rel (%p582) target = $region112
        $region111: #{tpu_custom_call.1} parent=83 // pred_region
          %585 = dma.done [#allocation12], 16
        $region112: #{tpu_custom_call.1} parent=83 // pred_fallthru
          _
        %s586 = smul.u32 3, %s36
        %p587 = scmp.lt.s32.totalorder %s586, 5
        %s588 = scalar_select %p587, %s586, 5
        %s589 = smul.addr %s588, 8
        %s590 = scalar_lea.vmem %s0, %s589
        %p591 = pneg %p57
        %p592 = pneg %p54
        %s593 = sand.u32 %s70, 1
        %s594 = scalar_lea.sflag [#allocation3], %s593
        %s595 = sand.u32 %s70, 1
        %s596 = smul.addr %s595, 3
        %s597 = scalar_lea.vmem [#allocation2], %s596
        %p598 = pneg %p83
        %p599 = pneg %p80
        %p600 = pneg %p104
        %p601 = pneg %p101
        %p602 = pneg %p125
        %p603 = pneg %p122
        %p604 = pneg %p146
        %p605 = pneg %p143
        %p606 = pneg %p167
        %p607 = pneg %p164
        %p608 = pneg %p188
        %p609 = pneg %p185
        %p610 = pneg %p209
        %p611 = pneg %p206
        %p612 = pneg %p230
        %p613 = pneg %p227
        %p614 = pneg %p251
        %p615 = pneg %p248
        %p616 = pneg %p272
        %p617 = pneg %p269
        %p618 = pneg %p293
        %p619 = pneg %p290
        %p620 = pneg %p314
        %p621 = pneg %p311
        %p622 = pneg %p335
        %p623 = pneg %p332
        %p624 = pneg %p356
        %p625 = pneg %p353
        %p626 = pneg %p377
        %p627 = pneg %p374
        %p628 = pneg %p403
        %p629 = pneg %p400
        %s630 = sand.u32 %s390, 1
        %s631 = scalar_lea.sflag [#allocation4], %s630
        %s632 = sand.u32 %s390, 1
        %s633 = smul.addr %s632, 24
        %s634 = scalar_lea.vmem [#allocation14], %s633
        %s635 = smul.u32 3, %s36
        %p636 = scmp.lt.s32.totalorder %s635, 5
        %s637 = scalar_select %p636, %s635, 5
        %s638 = smul.addr %s637, 8
        %s639 = scalar_lea.vmem %s0, %s638
        %s640 = smul.u32 3, %s36
        %s641 = smul.u32 3, %s36
        %s642 = smul.u32 3, %s36
        %v644 = vld [vmem:[%s639] sm:$0xff]
        %v645 = vld [vmem:[%s639 + $0x8] sm:$0xff]
        %v646 = vld [vmem:[%s639 + $0x10] sm:$0xff]
        %v647 = vld [vmem:[%s2] sm:$0x1]
        %v648 = vld [vmem:[%s3] sm:$0x1]
        %vm649 = vcmask 261120
        %v650 = vsel %vm649, %v644, 0.0
        %651 = vadd.xlane.f32.xlu0 %v650
        %v652 = vpop.xlane.xlu0 %651
        %v653 = vsel %vm649, %v645, 0.0
        %654 = vadd.xlane.f32.xlu0 %v653
        %v655 = vpop.xlane.xlu0 %654
        %v656 = vsel %vm649, %v646, 0.0
        %657 = vadd.xlane.f32.xlu0 %v656
        %v658 = vpop.xlane.xlu0 %657
        %v659 = vrcp.pop 32.0
        %v660 = vmul.f32 %v652, %v659
        %v661 = vmul.f32 %v655, %v659
        %v662 = vmul.f32 %v658, %v659
        %v663 = vsub.f32 %v644, %v660
        %v664 = vsub.f32 %v645, %v661
        %v665 = vsub.f32 %v646, %v662
        %v666 = vmul.f32 %v663, %v663
        %v667 = vmul.f32 %v664, %v664
        %v668 = vmul.f32 %v665, %v665
        %v669 = vsel %vm649, %v666, 0.0
        %670 = vadd.xlane.f32.xlu0 %v669
        %v671 = vpop.xlane.xlu0 %670
        %v672 = vsel %vm649, %v667, 0.0
        %673 = vadd.xlane.f32.xlu0 %v672
        %v674 = vpop.xlane.xlu0 %673
        %v675 = vsel %vm649, %v668, 0.0
        %676 = vadd.xlane.f32.xlu0 %v675
        %v677 = vpop.xlane.xlu0 %676
        %v678 = vmul.f32 %v671, %v659
        %v679 = vmul.f32 %v674, %v659
        %v680 = vmul.f32 %v677, %v659
        %v681 = vadd.f32 %v678, 1e-12
        %v682 = vadd.f32 %v679, 1e-12
        %v683 = vadd.f32 %v680, 1e-12
        %v684 = vrsqrt.pop %v681
        %v685 = vrsqrt.pop %v682
        %v686 = vrsqrt.pop %v683
        %v687 = vmul.f32 %v663, %v684
        %v688 = vmul.f32 %v664, %v685
        %v689 = vmul.f32 %v665, %v686
        %v691 = vlaneseq
        %v692 = vshrl.u32 %v691, 7
        %v693 = vsub.s32 0, %v692
        %v694 = vrot.slane %v647, %v693
        %v696 = vmul.f32 %v687, %v694
        %v697 = vmul.f32 %v688, %v694
        %v698 = vmul.f32 %v689, %v694
        %v700 = vlaneseq
        %v701 = vshrl.u32 %v700, 7
        %v702 = vsub.s32 0, %v701
        %v703 = vrot.slane %v648, %v702
        %v705 = vadd.f32 %v696, %v703
        %v706 = vadd.f32 %v697, %v703
        %v707 = vadd.f32 %v698, %v703
        %v708 = vpack.c.bf16 %v706, %v705
        %v709 = vpack.c.bf16 %v707, %v707
        %v710 = vld [vmem:[#allocation5] sm:$0xf]
        %v711 = vld [vmem:[#allocation5 + $0x4] sm:$0xf]
        %v712 = vld [vmem:[#allocation5 + $0x8] sm:$0xf]
        %v713 = vld [vmem:[#allocation5 + $0xc] sm:$0xf]
        %v714 = vld [vmem:[#allocation7] sm:$0x1]
        %v716 = vlaneseq
        %v717 = vshrl.u32 %v716, 7
        %v718 = vsub.s32 0, %v717
        %v719 = vrot.slane %v714, %v718
        %v725 = vunpack.c.l.b16 %v710
        %v726 = vunpack.c.l.b16 %v711
        %v727 = vunpack.c.l.b16 %v712
        %v728 = vunpack.c.l.b16 %v713
        %v729 = vpack.c.b16 %v726, %v725
        %v730 = vpack.c.b16 %v728, %v727
        %v734 = vsel %vm649, %v708, 0
        %v737 = vsel %vm649, %v709, 0
        %739 = vmatprep.subr.bf16.mxu0 0
        %740 = vmatpush1.bf16.msra.mxu0 %v729
        %741 = vmatprep.subr.bf16.mxu0 0
        %742 = vmatpush1.bf16.msra.mxu0 %v730
        %743 = vmatprep.subr.bf16.mxu0 0
        %744 = vmatpush1.bf16.msra.mxu0 0
        %745 = vmatprep.subr.bf16.mxu0 0
        %746 = vmatpush1.bf16.msra.mxu0 0
        %747 = vmatprep.subr.bf16.mxu0 0
        %748 = vmatpush1.bf16.msra.mxu0 0
        %749 = vmatprep.subr.bf16.mxu0 0
        %750 = vmatpush1.bf16.msra.mxu0 0
        %751 = vmatprep.subr.bf16.mxu0 0
        %752 = vmatpush1.bf16.msra.mxu0 0
        %753 = vmatprep.subr.bf16.mxu0 0
        %754 = vmatpush1.bf16.msra.mxu0 0
        %755 = vmatprep.subr.bf16.mxu0 0
        %756 = vmatpush1.bf16.msra.mxu0 0
        %757 = vmatprep.subr.bf16.mxu0 0
        %758 = vmatpush1.bf16.msra.mxu0 0
        %759 = vmatprep.subr.bf16.mxu0 0
        %760 = vmatpush1.bf16.msra.mxu0 0
        %761 = vmatprep.subr.bf16.mxu0 0
        %762 = vmatpush1.bf16.msra.mxu0 0
        %763 = vmatprep.subr.bf16.mxu0 0
        %764 = vmatpush1.bf16.msra.mxu0 0
        %765 = vmatprep.subr.bf16.mxu0 0
        %766 = vmatpush1.bf16.msra.mxu0 0
        %767 = vmatprep.subr.bf16.mxu0 0
        %768 = vmatpush1.bf16.msra.mxu0 0
        %769 = vmatprep.subr.bf16.mxu0 0
        %770 = vmatpush1.bf16.msra.mxu0 0
        %771 = vmatprep.mubr.bf16.mxu0 0
        %772 = vmatmul.mubr.bf16.gmra.mrb[0].mxu0 %v734
        %v773 = vpop.f32.mrb[0].mxu0
        %v774 = vadd.f32 %v719, %v773
        %v775 = vpop.f32.mrb[0].mxu0
        %v776 = vpop.f32.mrb[0].mxu0
        %v777 = vadd.f32 %v719, %v776
        %v778 = vpop.f32.mrb[0].mxu0
        %779 = vmatprep.mubr.bf16.mxu0 0
        %780 = vmatmul.mubr.bf16.gmra.mrb[0].mxu0 %v737
        %v781 = vpop.f32.mrb[0].mxu0
        %v782 = vadd.f32 %v719, %v781
        %v783 = vpop.f32.mrb[0].mxu0
        %v784 = vpop.f32.mrb[0].mxu0
        %v785 = vpop.f32.mrb[0].mxu0
        %786 = vdwg.mxu0
        %v787 = vld [vmem:[%s557] sm:$0x1]
        %v788 = vld [vmem:[%s557 + $0x1] sm:$0x1]
        %v789 = vld [vmem:[%s557 + $0x2] sm:$0x1]
        %v790 = vsub.f32 %v787, 1.0
        %v791 = vsub.f32 %v788, 1.0
        %v792 = vsub.f32 %v789, 1.0
        %v793 = vmul.f32 %v790, 10000.0
        %v794 = vmul.f32 %v791, 10000.0
        %v795 = vmul.f32 %v792, 10000.0
        %v796 = vld [vmem:[#allocation8] sm:$0xff]
        %v797 = vld [vmem:[#allocation8 + $0x8] sm:$0xff]
        %v798 = vld [vmem:[#allocation8 + $0x10] sm:$0xff]
        %v799 = vld [vmem:[#allocation8 + $0x18] sm:$0xff]
        %v800 = vpack.c.bf16 %v774, %v774
        %v801 = vpack.c.bf16 %v777, %v777
        %v802 = vpack.c.bf16 %v782, %v782
        %804 = vrot.lane.b32.xlu0 %v800, 96
        %v805 = vpop.permute.xlu0 %804
        %vm806 = vcmask 130048
        %v808 = vsel %vm806, %v800, 0
        %v811 = vsel %vm806, %v805, 0
        %813 = vmatprep.subr.bf16.mxu0 0
        %814 = vmatpush1.bf16.xpose.msra.mxu0 %v811
        %815 = vmatprep.subr.bf16.mxu0 0
        %816 = vmatpush1.bf16.xpose.msra.mxu0 0
        %817 = vmatprep.subr.bf16.mxu0 0
        %818 = vmatpush1.bf16.xpose.msra.mxu0 0
        %819 = vmatprep.subr.bf16.mxu0 0
        %820 = vmatpush1.bf16.xpose.msra.mxu0 0
        %821 = vmatprep.subr.bf16.mxu0 0
        %822 = vmatpush1.bf16.xpose.msra.mxu0 0
        %823 = vmatprep.subr.bf16.mxu0 0
        %824 = vmatpush1.bf16.xpose.msra.mxu0 0
        %825 = vmatprep.subr.bf16.mxu0 0
        %826 = vmatpush1.bf16.xpose.msra.mxu0 0
        %827 = vmatprep.subr.bf16.mxu0 0
        %828 = vmatpush1.bf16.xpose.msra.mxu0 0
        %829 = vmatprep.subr.bf16.mxu0 0
        %830 = vmatpush1.bf16.xpose.msra.mxu0 0
        %831 = vmatprep.subr.bf16.mxu0 0
        %832 = vmatpush1.bf16.xpose.msra.mxu0 0
        %833 = vmatprep.subr.bf16.mxu0 0
        %834 = vmatpush1.bf16.xpose.msra.mxu0 0
        %835 = vmatprep.subr.bf16.mxu0 0
        %836 = vmatpush1.bf16.xpose.msra.mxu0 0
        %837 = vmatprep.subr.bf16.mxu0 0
        %838 = vmatpush1.bf16.xpose.msra.mxu0 0
        %839 = vmatprep.subr.bf16.mxu0 0
        %840 = vmatpush1.bf16.xpose.msra.mxu0 0
        %841 = vmatprep.subr.bf16.mxu0 0
        %842 = vmatpush1.bf16.xpose.msra.mxu0 0
        %843 = vmatprep.subr.bf16.mxu0 0
        %844 = vmatpush1.bf16.xpose.msra.mxu0 0
        %845 = vmatprep.mubr.bf16.mxu0 0
        %846 = vmatmul.mubr.bf16.gmra.mrb[0].mxu0 %v808
        %v847 = vpop.f32.mrb[0].mxu0
        %v848 = vadd.f32 0.0, %v847
        %v849 = vpop.f32.mrb[0].mxu0
        %v850 = vpop.f32.mrb[0].mxu0
        %v851 = vpop.f32.mrb[0].mxu0
        %852 = vdwg.mxu0
        %854 = vrot.lane.b32.xlu0 %v801, 96
        %v855 = vpop.permute.xlu0 %854
        %v857 = vsel %vm806, %v801, 0
        %v860 = vsel %vm806, %v855, 0
        %862 = vmatprep.subr.bf16.mxu0 0
        %863 = vmatpush1.bf16.xpose.msra.mxu0 %v860
        %864 = vmatprep.subr.bf16.mxu0 0
        %865 = vmatpush1.bf16.xpose.msra.mxu0 0
        %866 = vmatprep.subr.bf16.mxu0 0
        %867 = vmatpush1.bf16.xpose.msra.mxu0 0
        %868 = vmatprep.subr.bf16.mxu0 0
        %869 = vmatpush1.bf16.xpose.msra.mxu0 0
        %870 = vmatprep.subr.bf16.mxu0 0
        %871 = vmatpush1.bf16.xpose.msra.mxu0 0
        %872 = vmatprep.subr.bf16.mxu0 0
        %873 = vmatpush1.bf16.xpose.msra.mxu0 0
        %874 = vmatprep.subr.bf16.mxu0 0
        %875 = vmatpush1.bf16.xpose.msra.mxu0 0
        %876 = vmatprep.subr.bf16.mxu0 0
        %877 = vmatpush1.bf16.xpose.msra.mxu0 0
        %878 = vmatprep.subr.bf16.mxu0 0
        %879 = vmatpush1.bf16.xpose.msra.mxu0 0
        %880 = vmatprep.subr.bf16.mxu0 0
        %881 = vmatpush1.bf16.xpose.msra.mxu0 0
        %882 = vmatprep.subr.bf16.mxu0 0
        %883 = vmatpush1.bf16.xpose.msra.mxu0 0
        %884 = vmatprep.subr.bf16.mxu0 0
        %885 = vmatpush1.bf16.xpose.msra.mxu0 0
        %886 = vmatprep.subr.bf16.mxu0 0
        %887 = vmatpush1.bf16.xpose.msra.mxu0 0
        %888 = vmatprep.subr.bf16.mxu0 0
        %889 = vmatpush1.bf16.xpose.msra.mxu0 0
        %890 = vmatprep.subr.bf16.mxu0 0
        %891 = vmatpush1.bf16.xpose.msra.mxu0 0
        %892 = vmatprep.subr.bf16.mxu0 0
        %893 = vmatpush1.bf16.xpose.msra.mxu0 0
        %894 = vmatprep.mubr.bf16.mxu0 0
        %895 = vmatmul.mubr.bf16.gmra.mrb[0].mxu0 %v857
        %v896 = vpop.f32.mrb[0].mxu0
        %v897 = vadd.f32 0.0, %v896
        %v898 = vpop.f32.mrb[0].mxu0
        %v899 = vpop.f32.mrb[0].mxu0
        %v900 = vpop.f32.mrb[0].mxu0
        %901 = vdwg.mxu0
        %903 = vrot.lane.b32.xlu0 %v802, 96
        %v904 = vpop.permute.xlu0 %903
        %v906 = vsel %vm806, %v802, 0
        %v909 = vsel %vm806, %v904, 0
        %911 = vmatprep.subr.bf16.mxu0 0
        %912 = vmatpush1.bf16.xpose.msra.mxu0 %v909
        %913 = vmatprep.subr.bf16.mxu0 0
        %914 = vmatpush1.bf16.xpose.msra.mxu0 0
        %915 = vmatprep.subr.bf16.mxu0 0
        %916 = vmatpush1.bf16.xpose.msra.mxu0 0
        %917 = vmatprep.subr.bf16.mxu0 0
        %918 = vmatpush1.bf16.xpose.msra.mxu0 0
        %919 = vmatprep.subr.bf16.mxu0 0
        %920 = vmatpush1.bf16.xpose.msra.mxu0 0
        %921 = vmatprep.subr.bf16.mxu0 0
        %922 = vmatpush1.bf16.xpose.msra.mxu0 0
        %923 = vmatprep.subr.bf16.mxu0 0
        %924 = vmatpush1.bf16.xpose.msra.mxu0 0
        %925 = vmatprep.subr.bf16.mxu0 0
        %926 = vmatpush1.bf16.xpose.msra.mxu0 0
        %927 = vmatprep.subr.bf16.mxu0 0
        %928 = vmatpush1.bf16.xpose.msra.mxu0 0
        %929 = vmatprep.subr.bf16.mxu0 0
        %930 = vmatpush1.bf16.xpose.msra.mxu0 0
        %931 = vmatprep.subr.bf16.mxu0 0
        %932 = vmatpush1.bf16.xpose.msra.mxu0 0
        %933 = vmatprep.subr.bf16.mxu0 0
        %934 = vmatpush1.bf16.xpose.msra.mxu0 0
        %935 = vmatprep.subr.bf16.mxu0 0
        %936 = vmatpush1.bf16.xpose.msra.mxu0 0
        %937 = vmatprep.subr.bf16.mxu0 0
        %938 = vmatpush1.bf16.xpose.msra.mxu0 0
        %939 = vmatprep.subr.bf16.mxu0 0
        %940 = vmatpush1.bf16.xpose.msra.mxu0 0
        %941 = vmatprep.subr.bf16.mxu0 0
        %942 = vmatpush1.bf16.xpose.msra.mxu0 0
        %943 = vmatprep.mubr.bf16.mxu0 0
        %944 = vmatmul.mubr.bf16.gmra.mrb[0].mxu0 %v906
        %v945 = vpop.f32.mrb[0].mxu0
        %v946 = vadd.f32 0.0, %v945
        %v947 = vpop.f32.mrb[0].mxu0
        %v948 = vpop.f32.mrb[0].mxu0
        %v949 = vpop.f32.mrb[0].mxu0
        %950 = vdwg.mxu0
        %v951 = vmul.f32 %v848, 0.25
        %v952 = vmul.f32 %v897, 0.25
        %v953 = vmul.f32 %v946, 0.25
        %v957 = vlaneseq
        %v958 = vshrl.u32 %v957, 7
        %v959 = vsub.s32 0, %v958
        %v960 = vrot.slane %v793, %v959
        %v961 = vlaneseq
        %v962 = vshrl.u32 %v961, 7
        %v963 = vsub.s32 0, %v962
        %v964 = vrot.slane %v794, %v963
        %v965 = vlaneseq
        %v966 = vshrl.u32 %v965, 7
        %v967 = vsub.s32 0, %v966
        %v968 = vrot.slane %v795, %v967
        %v972 = vadd.f32 %v951, %v960
        %v973 = vadd.f32 %v952, %v964
        %v974 = vadd.f32 %v953, %v968
        %vm975 = vcmask 64512
        %v976 = vsel %vm975, %v972, -inf
        %977 = vmax.xlane.f32.xlu0 %v976
        %v978 = vpop.xlane.xlu0 %977
        %v979 = vsel %vm975, %v973, -inf
        %980 = vmax.xlane.f32.xlu0 %v979
        %v981 = vpop.xlane.xlu0 %980
        %v982 = vsel %vm975, %v974, -inf
        %983 = vmax.xlane.f32.xlu0 %v982
        %v984 = vpop.xlane.xlu0 %983
        %v985 = vsub.f32 %v972, %v978
        %v986 = vsub.f32 %v973, %v981
        %v987 = vsub.f32 %v974, %v984
        %v988 = vmul.f32 %v985, 1.442695
        %v989 = vpow.pop %v988
        %v990 = vmul.f32 %v986, 1.442695
        %v991 = vpow.pop %v990
        %v992 = vmul.f32 %v987, 1.442695
        %v993 = vpow.pop %v992
        %v994 = vsel %vm975, %v989, 0.0
        %995 = vadd.xlane.f32.xlu0 %v994
        %v996 = vpop.xlane.xlu0 %995
        %v997 = vsel %vm975, %v991, 0.0
        %998 = vadd.xlane.f32.xlu0 %v997
        %v999 = vpop.xlane.xlu0 %998
        %v1000 = vsel %vm975, %v993, 0.0
        %1001 = vadd.xlane.f32.xlu0 %v1000
        %v1002 = vpop.xlane.xlu0 %1001
        %v1003 = vrcp.pop %v996
        %v1004 = vrcp.pop %v999
        %v1005 = vrcp.pop %v1002
        %v1006 = vmul.f32 %v989, %v1003
        %v1007 = vmul.f32 %v991, %v1004
        %v1008 = vmul.f32 %v993, %v1005
        %v1009 = vpack.c.bf16 %v1006, %v1006
        %v1010 = vpack.c.bf16 %v1007, %v1007
        %v1011 = vpack.c.bf16 %v1008, %v1008
        %1012 = vrot.lane.b32.xlu0 %v800, 64
        %v1013 = vpop.permute.xlu0 %1012
        %v1015 = vsel %vm975, %v1009, 0
        %vm1017 = vcmask 1043456
        %v1019 = vsel %vm1017, %v1013, 0
        %1021 = vmatprep.subr.bf16.mxu0 0
        %1022 = vmatpush1.bf16.msra.mxu0 %v1019
        %1023 = vmatprep.subr.bf16.mxu0 0
        %1024 = vmatpush1.bf16.msra.mxu0 0
        %1025 = vmatprep.subr.bf16.mxu0 0
        %1026 = vmatpush1.bf16.msra.mxu0 0
        %1027 = vmatprep.subr.bf16.mxu0 0
        %1028 = vmatpush1.bf16.msra.mxu0 0
        %1029 = vmatprep.subr.bf16.mxu0 0
        %1030 = vmatpush1.bf16.msra.mxu0 0
        %1031 = vmatprep.subr.bf16.mxu0 0
        %1032 = vmatpush1.bf16.msra.mxu0 0
        %1033 = vmatprep.subr.bf16.mxu0 0
        %1034 = vmatpush1.bf16.msra.mxu0 0
        %1035 = vmatprep.subr.bf16.mxu0 0
        %1036 = vmatpush1.bf16.msra.mxu0 0
        %1037 = vmatprep.subr.bf16.mxu0 0
        %1038 = vmatpush1.bf16.msra.mxu0 0
        %1039 = vmatprep.subr.bf16.mxu0 0
        %1040 = vmatpush1.bf16.msra.mxu0 0
        %1041 = vmatprep.subr.bf16.mxu0 0
        %1042 = vmatpush1.bf16.msra.mxu0 0
        %1043 = vmatprep.subr.bf16.mxu0 0
        %1044 = vmatpush1.bf16.msra.mxu0 0
        %1045 = vmatprep.subr.bf16.mxu0 0
        %1046 = vmatpush1.bf16.msra.mxu0 0
        %1047 = vmatprep.subr.bf16.mxu0 0
        %1048 = vmatpush1.bf16.msra.mxu0 0
        %1049 = vmatprep.subr.bf16.mxu0 0
        %1050 = vmatpush1.bf16.msra.mxu0 0
        %1051 = vmatprep.subr.bf16.mxu0 0
        %1052 = vmatpush1.bf16.msra.mxu0 0
        %1053 = vmatprep.mubr.bf16.mxu0 0
        %1054 = vmatmul.mubr.bf16.gmra.mrb[0].mxu0 %v1015
        %v1055 = vpop.f32.mrb[0].mxu0
        %v1056 = vadd.f32 0.0, %v1055
        %v1057 = vpop.f32.mrb[0].mxu0
        %v1058 = vpop.f32.mrb[0].mxu0
        %v1059 = vpop.f32.mrb[0].mxu0
        %1060 = vdwg.mxu0
        %1061 = vrot.lane.b32.xlu0 %v801, 64
        %v1062 = vpop.permute.xlu0 %1061
        %v1064 = vsel %vm975, %v1010, 0
        %v1067 = vsel %vm1017, %v1062, 0
        %1069 = vmatprep.subr.bf16.mxu0 0
        %1070 = vmatpush1.bf16.msra.mxu0 %v1067
        %1071 = vmatprep.subr.bf16.mxu0 0
        %1072 = vmatpush1.bf16.msra.mxu0 0
        %1073 = vmatprep.subr.bf16.mxu0 0
        %1074 = vmatpush1.bf16.msra.mxu0 0
        %1075 = vmatprep.subr.bf16.mxu0 0
        %1076 = vmatpush1.bf16.msra.mxu0 0
        %1077 = vmatprep.subr.bf16.mxu0 0
        %1078 = vmatpush1.bf16.msra.mxu0 0
        %1079 = vmatprep.subr.bf16.mxu0 0
        %1080 = vmatpush1.bf16.msra.mxu0 0
        %1081 = vmatprep.subr.bf16.mxu0 0
        %1082 = vmatpush1.bf16.msra.mxu0 0
        %1083 = vmatprep.subr.bf16.mxu0 0
        %1084 = vmatpush1.bf16.msra.mxu0 0
        %1085 = vmatprep.subr.bf16.mxu0 0
        %1086 = vmatpush1.bf16.msra.mxu0 0
        %1087 = vmatprep.subr.bf16.mxu0 0
        %1088 = vmatpush1.bf16.msra.mxu0 0
        %1089 = vmatprep.subr.bf16.mxu0 0
        %1090 = vmatpush1.bf16.msra.mxu0 0
        %1091 = vmatprep.subr.bf16.mxu0 0
        %1092 = vmatpush1.bf16.msra.mxu0 0
        %1093 = vmatprep.subr.bf16.mxu0 0
        %1094 = vmatpush1.bf16.msra.mxu0 0
        %1095 = vmatprep.subr.bf16.mxu0 0
        %1096 = vmatpush1.bf16.msra.mxu0 0
        %1097 = vmatprep.subr.bf16.mxu0 0
        %1098 = vmatpush1.bf16.msra.mxu0 0
        %1099 = vmatprep.subr.bf16.mxu0 0
        %1100 = vmatpush1.bf16.msra.mxu0 0
        %1101 = vmatprep.mubr.bf16.mxu0 0
        %1102 = vmatmul.mubr.bf16.gmra.mrb[0].mxu0 %v1064
        %v1103 = vpop.f32.mrb[0].mxu0
        %v1104 = vadd.f32 0.0, %v1103
        %v1105 = vpop.f32.mrb[0].mxu0
        %v1106 = vpop.f32.mrb[0].mxu0
        %v1107 = vpop.f32.mrb[0].mxu0
        %1108 = vdwg.mxu0
        %1109 = vrot.lane.b32.xlu0 %v802, 64
        %v1110 = vpop.permute.xlu0 %1109
        %v1112 = vsel %vm975, %v1011, 0
        %v1115 = vsel %vm1017, %v1110, 0
        %1117 = vmatprep.subr.bf16.mxu0 0
        %1118 = vmatpush1.bf16.msra.mxu0 %v1115
        %1119 = vmatprep.subr.bf16.mxu0 0
        %1120 = vmatpush1.bf16.msra.mxu0 0
        %1121 = vmatprep.subr.bf16.mxu0 0
        %1122 = vmatpush1.bf16.msra.mxu0 0
        %1123 = vmatprep.subr.bf16.mxu0 0
        %1124 = vmatpush1.bf16.msra.mxu0 0
        %1125 = vmatprep.subr.bf16.mxu0 0
        %1126 = vmatpush1.bf16.msra.mxu0 0
        %1127 = vmatprep.subr.bf16.mxu0 0
        %1128 = vmatpush1.bf16.msra.mxu0 0
        %1129 = vmatprep.subr.bf16.mxu0 0
        %1130 = vmatpush1.bf16.msra.mxu0 0
        %1131 = vmatprep.subr.bf16.mxu0 0
        %1132 = vmatpush1.bf16.msra.mxu0 0
        %1133 = vmatprep.subr.bf16.mxu0 0
        %1134 = vmatpush1.bf16.msra.mxu0 0
        %1135 = vmatprep.subr.bf16.mxu0 0
        %1136 = vmatpush1.bf16.msra.mxu0 0
        %1137 = vmatprep.subr.bf16.mxu0 0
        %1138 = vmatpush1.bf16.msra.mxu0 0
        %1139 = vmatprep.subr.bf16.mxu0 0
        %1140 = vmatpush1.bf16.msra.mxu0 0
        %1141 = vmatprep.subr.bf16.mxu0 0
        %1142 = vmatpush1.bf16.msra.mxu0 0
        %1143 = vmatprep.subr.bf16.mxu0 0
        %1144 = vmatpush1.bf16.msra.mxu0 0
        %1145 = vmatprep.subr.bf16.mxu0 0
        %1146 = vmatpush1.bf16.msra.mxu0 0
        %1147 = vmatprep.subr.bf16.mxu0 0
        %1148 = vmatpush1.bf16.msra.mxu0 0
        %1149 = vmatprep.mubr.bf16.mxu0 0
        %1150 = vmatmul.mubr.bf16.gmra.mrb[0].mxu0 %v1112
        %v1151 = vpop.f32.mrb[0].mxu0
        %v1152 = vadd.f32 0.0, %v1151
        %v1153 = vpop.f32.mrb[0].mxu0
        %v1154 = vpop.f32.mrb[0].mxu0
        %v1155 = vpop.f32.mrb[0].mxu0
        %1156 = vdwg.mxu0
        %1157 = vrot.lane.b32.xlu0 %v800, 112
        %v1158 = vpop.permute.xlu0 %1157
        %1159 = vrot.lane.b32.xlu0 %v800, 80
        %v1160 = vpop.permute.xlu0 %1159
        %v1162 = vsel %vm806, %v1158, 0
        %v1165 = vsel %vm806, %v1160, 0
        %1167 = vmatprep.subr.bf16.mxu0 0
        %1168 = vmatpush1.bf16.xpose.msra.mxu0 %v1165
        %1169 = vmatprep.subr.bf16.mxu0 0
        %1170 = vmatpush1.bf16.xpose.msra.mxu0 0
        %1171 = vmatprep.subr.bf16.mxu0 0
        %1172 = vmatpush1.bf16.xpose.msra.mxu0 0
        %1173 = vmatprep.subr.bf16.mxu0 0
        %1174 = vmatpush1.bf16.xpose.msra.mxu0 0
        %1175 = vmatprep.subr.bf16.mxu0 0
        %1176 = vmatpush1.bf16.xpose.msra.mxu0 0
        %1177 = vmatprep.subr.bf16.mxu0 0
        %1178 = vmatpush1.bf16.xpose.msra.mxu0 0
        %1179 = vmatprep.subr.bf16.mxu0 0
        %1180 = vmatpush1.bf16.xpose.msra.mxu0 0
        %1181 = vmatprep.subr.bf16.mxu0 0
        %1182 = vmatpush1.bf16.xpose.msra.mxu0 0
        %1183 = vmatprep.subr.bf16.mxu0 0
        %1184 = vmatpush1.bf16.xpose.msra.mxu0 0
        %1185 = vmatprep.subr.bf16.mxu0 0
        %1186 = vmatpush1.bf16.xpose.msra.mxu0 0
        %1187 = vmatprep.subr.bf16.mxu0 0
        %1188 = vmatpush1.bf16.xpose.msra.mxu0 0
        %1189 = vmatprep.subr.bf16.mxu0 0
        %1190 = vmatpush1.bf16.xpose.msra.mxu0 0
        %1191 = vmatprep.subr.bf16.mxu0 0
        %1192 = vmatpush1.bf16.xpose.msra.mxu0 0
        %1193 = vmatprep.subr.bf16.mxu0 0
        %1194 = vmatpush1.bf16.xpose.msra.mxu0 0
        %1195 = vmatprep.subr.bf16.mxu0 0
        %1196 = vmatpush1.bf16.xpose.msra.mxu0 0
        %1197 = vmatprep.subr.bf16.mxu0 0
        %1198 = vmatpush1.bf16.xpose.msra.mxu0 0
        %1199 = vmatprep.mubr.bf16.mxu0 0
        %1200 = vmatmul.mubr.bf16.gmra.mrb[0].mxu0 %v1162
        %v1201 = vpop.f32.mrb[0].mxu0
        %v1202 = vadd.f32 0.0, %v1201
        %v1203 = vpop.f32.mrb[0].mxu0
        %v1204 = vpop.f32.mrb[0].mxu0
        %v1205 = vpop.f32.mrb[0].mxu0
        %1206 = vdwg.mxu0
        %1207 = vrot.lane.b32.xlu0 %v801, 112
        %v1208 = vpop.permute.xlu0 %1207
        %1209 = vrot.lane.b32.xlu0 %v801, 80
        %v1210 = vpop.permute.xlu0 %1209
        %v1212 = vsel %vm806, %v1208, 0
        %v1215 = vsel %vm806, %v1210, 0
        %1217 = vmatprep.subr.bf16.mxu0 0
        %1218 = vmatpush1.bf16.xpose.msra.mxu0 %v1215
        %1219 = vmatprep.subr.bf16.mxu0 0
        %1220 = vmatpush1.bf16.xpose.msra.mxu0 0
        %1221 = vmatprep.subr.bf16.mxu0 0
        %1222 = vmatpush1.bf16.xpose.msra.mxu0 0
        %1223 = vmatprep.subr.bf16.mxu0 0
        %1224 = vmatpush1.bf16.xpose.msra.mxu0 0
        %1225 = vmatprep.subr.bf16.mxu0 0
        %1226 = vmatpush1.bf16.xpose.msra.mxu0 0
        %1227 = vmatprep.subr.bf16.mxu0 0
        %1228 = vmatpush1.bf16.xpose.msra.mxu0 0
        %1229 = vmatprep.subr.bf16.mxu0 0
        %1230 = vmatpush1.bf16.xpose.msra.mxu0 0
        %1231 = vmatprep.subr.bf16.mxu0 0
        %1232 = vmatpush1.bf16.xpose.msra.mxu0 0
        %1233 = vmatprep.subr.bf16.mxu0 0
        %1234 = vmatpush1.bf16.xpose.msra.mxu0 0
        %1235 = vmatprep.subr.bf16.mxu0 0
        %1236 = vmatpush1.bf16.xpose.msra.mxu0 0
        %1237 = vmatprep.subr.bf16.mxu0 0
        %1238 = vmatpush1.bf16.xpose.msra.mxu0 0
        %1239 = vmatprep.subr.bf16.mxu0 0
        %1240 = vmatpush1.bf16.xpose.msra.mxu0 0
        %1241 = vmatprep.subr.bf16.mxu0 0
        %1242 = vmatpush1.bf16.xpose.msra.mxu0 0
        %1243 = vmatprep.subr.bf16.mxu0 0
        %1244 = vmatpush1.bf16.xpose.msra.mxu0 0
        %1245 = vmatprep.subr.bf16.mxu0 0
        %1246 = vmatpush1.bf16.xpose.msra.mxu0 0
        %1247 = vmatprep.subr.bf16.mxu0 0
        %1248 = vmatpush1.bf16.xpose.msra.mxu0 0
        %1249 = vmatprep.mubr.bf16.mxu0 0
        %1250 = vmatmul.mubr.bf16.gmra.mrb[0].mxu0 %v1212
        %v1251 = vpop.f32.mrb[0].mxu0
        %v1252 = vadd.f32 0.0, %v1251
        %v1253 = vpop.f32.mrb[0].mxu0
        %v1254 = vpop.f32.mrb[0].mxu0
        %v1255 = vpop.f32.mrb[0].mxu0
        %1256 = vdwg.mxu0
        %1257 = vrot.lane.b32.xlu0 %v802, 112
        %v1258 = vpop.permute.xlu0 %1257
        %1259 = vrot.lane.b32.xlu0 %v802, 80
        %v1260 = vpop.permute.xlu0 %1259
        %v1262 = vsel %vm806, %v1258, 0
        %v1265 = vsel %vm806, %v1260, 0
        %1267 = vmatprep.subr.bf16.mxu0 0
        %1268 = vmatpush1.bf16.xpose.msra.mxu0 %v1265
        %1269 = vmatprep.subr.bf16.mxu0 0
        %1270 = vmatpush1.bf16.xpose.msra.mxu0 0
        %1271 = vmatprep.subr.bf16.mxu0 0
        %1272 = vmatpush1.bf16.xpose.msra.mxu0 0
        %1273 = vmatprep.subr.bf16.mxu0 0
        %1274 = vmatpush1.bf16.xpose.msra.mxu0 0
        %1275 = vmatprep.subr.bf16.mxu0 0
        %1276 = vmatpush1.bf16.xpose.msra.mxu0 0
        %1277 = vmatprep.subr.bf16.mxu0 0
        %1278 = vmatpush1.bf16.xpose.msra.mxu0 0
        %1279 = vmatprep.subr.bf16.mxu0 0
        %1280 = vmatpush1.bf16.xpose.msra.mxu0 0
        %1281 = vmatprep.subr.bf16.mxu0 0
        %1282 = vmatpush1.bf16.xpose.msra.mxu0 0
        %1283 = vmatprep.subr.bf16.mxu0 0
        %1284 = vmatpush1.bf16.xpose.msra.mxu0 0
        %1285 = vmatprep.subr.bf16.mxu0 0
        %1286 = vmatpush1.bf16.xpose.msra.mxu0 0
        %1287 = vmatprep.subr.bf16.mxu0 0
        %1288 = vmatpush1.bf16.xpose.msra.mxu0 0
        %1289 = vmatprep.subr.bf16.mxu0 0
        %1290 = vmatpush1.bf16.xpose.msra.mxu0 0
        %1291 = vmatprep.subr.bf16.mxu0 0
        %1292 = vmatpush1.bf16.xpose.msra.mxu0 0
        %1293 = vmatprep.subr.bf16.mxu0 0
        %1294 = vmatpush1.bf16.xpose.msra.mxu0 0
        %1295 = vmatprep.subr.bf16.mxu0 0
        %1296 = vmatpush1.bf16.xpose.msra.mxu0 0
        %1297 = vmatprep.subr.bf16.mxu0 0
        %1298 = vmatpush1.bf16.xpose.msra.mxu0 0
        %1299 = vmatprep.mubr.bf16.mxu0 0
        %1300 = vmatmul.mubr.bf16.gmra.mrb[0].mxu0 %v1262
        %v1301 = vpop.f32.mrb[0].mxu0
        %v1302 = vadd.f32 0.0, %v1301
        %v1303 = vpop.f32.mrb[0].mxu0
        %v1304 = vpop.f32.mrb[0].mxu0
        %v1305 = vpop.f32.mrb[0].mxu0
        %1306 = vdwg.mxu0
        %v1307 = vmul.f32 %v1202, 0.25
        %v1308 = vmul.f32 %v1252, 0.25
        %v1309 = vmul.f32 %v1302, 0.25
        %v1310 = vadd.f32 %v1307, %v960
        %v1311 = vadd.f32 %v1308, %v964
        %v1312 = vadd.f32 %v1309, %v968
        %v1313 = vsel %vm975, %v1310, -inf
        %1314 = vmax.xlane.f32.xlu0 %v1313
        %v1315 = vpop.xlane.xlu0 %1314
        %v1316 = vsel %vm975, %v1311, -inf
        %1317 = vmax.xlane.f32.xlu0 %v1316
        %v1318 = vpop.xlane.xlu0 %1317
        %v1319 = vsel %vm975, %v1312, -inf
        %1320 = vmax.xlane.f32.xlu0 %v1319
        %v1321 = vpop.xlane.xlu0 %1320
        %v1322 = vsub.f32 %v1310, %v1315
        %v1323 = vsub.f32 %v1311, %v1318
        %v1324 = vsub.f32 %v1312, %v1321
        %v1325 = vmul.f32 %v1322, 1.442695
        %v1326 = vpow.pop %v1325
        %v1327 = vmul.f32 %v1323, 1.442695
        %v1328 = vpow.pop %v1327
        %v1329 = vmul.f32 %v1324, 1.442695
        %v1330 = vpow.pop %v1329
        %v1331 = vsel %vm975, %v1326, 0.0
        %1332 = vadd.xlane.f32.xlu0 %v1331
        %v1333 = vpop.xlane.xlu0 %1332
        %v1334 = vsel %vm975, %v1328, 0.0
        %1335 = vadd.xlane.f32.xlu0 %v1334
        %v1336 = vpop.xlane.xlu0 %1335
        %v1337 = vsel %vm975, %v1330, 0.0
        %1338 = vadd.xlane.f32.xlu0 %v1337
        %v1339 = vpop.xlane.xlu0 %1338
        %v1340 = vrcp.pop %v1333
        %v1341 = vrcp.pop %v1336
        %v1342 = vrcp.pop %v1339
        %v1343 = vmul.f32 %v1326, %v1340
        %v1344 = vmul.f32 %v1328, %v1341
        %v1345 = vmul.f32 %v1330, %v1342
        %v1346 = vpack.c.bf16 %v1343, %v1343
        %v1347 = vpack.c.bf16 %v1344, %v1344
        %v1348 = vpack.c.bf16 %v1345, %v1345
        %1349 = vrot.lane.b32.xlu0 %v800, 48
        %v1350 = vpop.permute.xlu0 %1349
        %v1352 = vsel %vm975, %v1346, 0
        %v1355 = vsel %vm1017, %v1350, 0
        %1357 = vmatprep.subr.bf16.mxu0 0
        %1358 = vmatpush1.bf16.msra.mxu0 %v1355
        %1359 = vmatprep.subr.bf16.mxu0 0
        %1360 = vmatpush1.bf16.msra.mxu0 0
        %1361 = vmatprep.subr.bf16.mxu0 0
        %1362 = vmatpush1.bf16.msra.mxu0 0
        %1363 = vmatprep.subr.bf16.mxu0 0
        %1364 = vmatpush1.bf16.msra.mxu0 0
        %1365 = vmatprep.subr.bf16.mxu0 0
        %1366 = vmatpush1.bf16.msra.mxu0 0
        %1367 = vmatprep.subr.bf16.mxu0 0
        %1368 = vmatpush1.bf16.msra.mxu0 0
        %1369 = vmatprep.subr.bf16.mxu0 0
        %1370 = vmatpush1.bf16.msra.mxu0 0
        %1371 = vmatprep.subr.bf16.mxu0 0
        %1372 = vmatpush1.bf16.msra.mxu0 0
        %1373 = vmatprep.subr.bf16.mxu0 0
        %1374 = vmatpush1.bf16.msra.mxu0 0
        %1375 = vmatprep.subr.bf16.mxu0 0
        %1376 = vmatpush1.bf16.msra.mxu0 0
        %1377 = vmatprep.subr.bf16.mxu0 0
        %1378 = vmatpush1.bf16.msra.mxu0 0
        %1379 = vmatprep.subr.bf16.mxu0 0
        %1380 = vmatpush1.bf16.msra.mxu0 0
        %1381 = vmatprep.subr.bf16.mxu0 0
        %1382 = vmatpush1.bf16.msra.mxu0 0
        %1383 = vmatprep.subr.bf16.mxu0 0
        %1384 = vmatpush1.bf16.msra.mxu0 0
        %1385 = vmatprep.subr.bf16.mxu0 0
        %1386 = vmatpush1.bf16.msra.mxu0 0
        %1387 = vmatprep.subr.bf16.mxu0 0
        %1388 = vmatpush1.bf16.msra.mxu0 0
        %1389 = vmatprep.mubr.bf16.mxu0 0
        %1390 = vmatmul.mubr.bf16.gmra.mrb[0].mxu0 %v1352
        %v1391 = vpop.f32.mrb[0].mxu0
        %v1392 = vadd.f32 0.0, %v1391
        %v1393 = vpop.f32.mrb[0].mxu0
        %v1394 = vpop.f32.mrb[0].mxu0
        %v1395 = vpop.f32.mrb[0].mxu0
        %1396 = vdwg.mxu0
        %1397 = vrot.lane.b32.xlu0 %v801, 48
        %v1398 = vpop.permute.xlu0 %1397
        %v1400 = vsel %vm975, %v1347, 0
        %v1403 = vsel %vm1017, %v1398, 0
        %1405 = vmatprep.subr.bf16.mxu0 0
        %1406 = vmatpush1.bf16.msra.mxu0 %v1403
        %1407 = vmatprep.subr.bf16.mxu0 0
        %1408 = vmatpush1.bf16.msra.mxu0 0
        %1409 = vmatprep.subr.bf16.mxu0 0
        %1410 = vmatpush1.bf16.msra.mxu0 0
        %1411 = vmatprep.subr.bf16.mxu0 0
        %1412 = vmatpush1.bf16.msra.mxu0 0
        %1413 = vmatprep.subr.bf16.mxu0 0
        %1414 = vmatpush1.bf16.msra.mxu0 0
        %1415 = vmatprep.subr.bf16.mxu0 0
        %1416 = vmatpush1.bf16.msra.mxu0 0
        %1417 = vmatprep.subr.bf16.mxu0 0
        %1418 = vmatpush1.bf16.msra.mxu0 0
        %1419 = vmatprep.subr.bf16.mxu0 0
        %1420 = vmatpush1.bf16.msra.mxu0 0
        %1421 = vmatprep.subr.bf16.mxu0 0
        %1422 = vmatpush1.bf16.msra.mxu0 0
        %1423 = vmatprep.subr.bf16.mxu0 0
        %1424 = vmatpush1.bf16.msra.mxu0 0
        %1425 = vmatprep.subr.bf16.mxu0 0
        %1426 = vmatpush1.bf16.msra.mxu0 0
        %1427 = vmatprep.subr.bf16.mxu0 0
        %1428 = vmatpush1.bf16.msra.mxu0 0
        %1429 = vmatprep.subr.bf16.mxu0 0
        %1430 = vmatpush1.bf16.msra.mxu0 0
        %1431 = vmatprep.subr.bf16.mxu0 0
        %1432 = vmatpush1.bf16.msra.mxu0 0
        %1433 = vmatprep.subr.bf16.mxu0 0
        %1434 = vmatpush1.bf16.msra.mxu0 0
        %1435 = vmatprep.subr.bf16.mxu0 0
        %1436 = vmatpush1.bf16.msra.mxu0 0
        %1437 = vmatprep.mubr.bf16.mxu0 0
        %1438 = vmatmul.mubr.bf16.gmra.mrb[0].mxu0 %v1400
        %v1439 = vpop.f32.mrb[0].mxu0
        %v1440 = vadd.f32 0.0, %v1439
        %v1441 = vpop.f32.mrb[0].mxu0
        %v1442 = vpop.f32.mrb[0].mxu0
        %v1443 = vpop.f32.mrb[0].mxu0
        %1444 = vdwg.mxu0
        %1445 = vrot.lane.b32.xlu0 %v802, 48
        %v1446 = vpop.permute.xlu0 %1445
        %v1448 = vsel %vm975, %v1348, 0
        %v1451 = vsel %vm1017, %v1446, 0
        %1453 = vmatprep.subr.bf16.mxu0 0
        %1454 = vmatpush1.bf16.msra.mxu0 %v1451
        %1455 = vmatprep.subr.bf16.mxu0 0
        %1456 = vmatpush1.bf16.msra.mxu0 0
        %1457 = vmatprep.subr.bf16.mxu0 0
        %1458 = vmatpush1.bf16.msra.mxu0 0
        %1459 = vmatprep.subr.bf16.mxu0 0
        %1460 = vmatpush1.bf16.msra.mxu0 0
        %1461 = vmatprep.subr.bf16.mxu0 0
        %1462 = vmatpush1.bf16.msra.mxu0 0
        %1463 = vmatprep.subr.bf16.mxu0 0
        %1464 = vmatpush1.bf16.msra.mxu0 0
        %1465 = vmatprep.subr.bf16.mxu0 0
        %1466 = vmatpush1.bf16.msra.mxu0 0
        %1467 = vmatprep.subr.bf16.mxu0 0
        %1468 = vmatpush1.bf16.msra.mxu0 0
        %1469 = vmatprep.subr.bf16.mxu0 0
        %1470 = vmatpush1.bf16.msra.mxu0 0
        %1471 = vmatprep.subr.bf16.mxu0 0
        %1472 = vmatpush1.bf16.msra.mxu0 0
        %1473 = vmatprep.subr.bf16.mxu0 0
        %1474 = vmatpush1.bf16.msra.mxu0 0
        %1475 = vmatprep.subr.bf16.mxu0 0
        %1476 = vmatpush1.bf16.msra.mxu0 0
        %1477 = vmatprep.subr.bf16.mxu0 0
        %1478 = vmatpush1.bf16.msra.mxu0 0
        %1479 = vmatprep.subr.bf16.mxu0 0
        %1480 = vmatpush1.bf16.msra.mxu0 0
        %1481 = vmatprep.subr.bf16.mxu0 0
        %1482 = vmatpush1.bf16.msra.mxu0 0
        %1483 = vmatprep.subr.bf16.mxu0 0
        %1484 = vmatpush1.bf16.msra.mxu0 0
        %1485 = vmatprep.mubr.bf16.mxu0 0
        %1486 = vmatmul.mubr.bf16.gmra.mrb[0].mxu0 %v1448
        %v1487 = vpop.f32.mrb[0].mxu0
        %v1488 = vadd.f32 0.0, %v1487
        %v1489 = vpop.f32.mrb[0].mxu0
        %v1490 = vpop.f32.mrb[0].mxu0
        %v1491 = vpop.f32.mrb[0].mxu0
        %1492 = vdwg.mxu0
        %v1494 = vsel %vm806, %v1392, 0
        %v1497 = vsel %vm806, %v1440, 0
        %v1500 = vsel %vm806, %v1488, 0
        %1502 = vmatprep.subr.mxu0 0.0
        %1503 = vmatpush1.msra.mxu0 %v798
        %1504 = vmatprep.subr.mxu0 0.0
        %1505 = vmatpush1.msra.mxu0 %v799
        %1506 = vmatprep.subr.mxu0 0.0
        %1507 = vmatpush1.msra.mxu0 0.0
        %1508 = vmatprep.subr.mxu0 0.0
        %1509 = vmatpush1.msra.mxu0 0.0
        %1510 = vmatprep.subr.mxu0 0.0
        %1511 = vmatpush1.msra.mxu0 0.0
        %1512 = vmatprep.subr.mxu0 0.0
        %1513 = vmatpush1.msra.mxu0 0.0
        %1514 = vmatprep.subr.mxu0 0.0
        %1515 = vmatpush1.msra.mxu0 0.0
        %1516 = vmatprep.subr.mxu0 0.0
        %1517 = vmatpush1.msra.mxu0 0.0
        %1518 = vmatprep.subr.mxu0 0.0
        %1519 = vmatpush1.msra.mxu0 0.0
        %1520 = vmatprep.subr.mxu0 0.0
        %1521 = vmatpush1.msra.mxu0 0.0
        %1522 = vmatprep.subr.mxu0 0.0
        %1523 = vmatpush1.msra.mxu0 0.0
        %1524 = vmatprep.subr.mxu0 0.0
        %1525 = vmatpush1.msra.mxu0 0.0
        %1526 = vmatprep.subr.mxu0 0.0
        %1527 = vmatpush1.msra.mxu0 0.0
        %1528 = vmatprep.subr.mxu0 0.0
        %1529 = vmatpush1.msra.mxu0 0.0
        %1530 = vmatprep.subr.mxu0 0.0
        %1531 = vmatpush1.msra.mxu0 0.0
        %1532 = vmatprep.subr.mxu0 0.0
        %1533 = vmatpush1.msra.mxu0 0.0
        %1534 = vmatprep.subr.mxu0 0.0
        %1535 = vmatpush1.msra.mxu0 0.0
        %1536 = vmatprep.subr.mxu0 0.0
        %1537 = vmatpush1.msra.mxu0 0.0
        %1538 = vmatprep.subr.mxu0 0.0
        %1539 = vmatpush1.msra.mxu0 0.0
        %1540 = vmatprep.subr.mxu0 0.0
        %1541 = vmatpush1.msra.mxu0 0.0
        %1542 = vmatprep.subr.mxu0 0.0
        %1543 = vmatpush1.msra.mxu0 0.0
        %1544 = vmatprep.subr.mxu0 0.0
        %1545 = vmatpush1.msra.mxu0 0.0
        %1546 = vmatprep.subr.mxu0 0.0
        %1547 = vmatpush1.msra.mxu0 0.0
        %1548 = vmatprep.subr.mxu0 0.0
        %1549 = vmatpush1.msra.mxu0 0.0
        %1550 = vmatprep.subr.mxu0 0.0
        %1551 = vmatpush1.msra.mxu0 0.0
        %1552 = vmatprep.subr.mxu0 0.0
        %1553 = vmatpush1.msra.mxu0 0.0
        %1554 = vmatprep.subr.mxu0 0.0
        %1555 = vmatpush1.msra.mxu0 0.0
        %1556 = vmatprep.subr.mxu0 0.0
        %1557 = vmatpush1.msra.mxu0 0.0
        %1558 = vmatprep.subr.mxu0 0.0
        %1559 = vmatpush1.msra.mxu0 0.0
        %1560 = vmatprep.subr.mxu0 0.0
        %1561 = vmatpush1.msra.mxu0 0.0
        %1562 = vmatprep.subr.mxu0 0.0
        %1563 = vmatpush1.msra.mxu0 0.0
        %1564 = vmatprep.subr.mxu0 0.0
        %1565 = vmatpush1.msra.mxu0 0.0
        %1566 = vmatprep.mubr.f32.mxu0 0.0
        %1567 = vmatmul.mubr.f32.gmra.mrb[0].mxu0 %v1494
        %v1568 = vpop.f32.mrb[0].mxu0
        %v1569 = vadd.f32 0.0, %v1568
        %v1570 = vpop.f32.mrb[0].mxu0
        %1571 = vmatprep.mubr.f32.mxu0 0.0
        %1572 = vmatmul.mubr.f32.gmra.mrb[0].mxu0 %v1497
        %v1573 = vpop.f32.mrb[0].mxu0
        %v1574 = vadd.f32 0.0, %v1573
        %v1575 = vpop.f32.mrb[0].mxu0
        %1576 = vmatprep.mubr.f32.mxu0 0.0
        %1577 = vmatmul.mubr.f32.gmra.mrb[0].mxu0 %v1500
        %v1578 = vpop.f32.mrb[0].mxu0
        %v1579 = vadd.f32 0.0, %v1578
        %v1580 = vpop.f32.mrb[0].mxu0
        %1581 = vdwg.mxu0
        %v1583 = vsel %vm806, %v1056, 0
        %v1586 = vsel %vm806, %v1104, 0
        %v1589 = vsel %vm806, %v1152, 0
        %1591 = vmatprep.subr.mxu0 0.0
        %1592 = vmatpush1.msra.mxu0 %v796
        %1593 = vmatprep.subr.mxu0 0.0
        %1594 = vmatpush1.msra.mxu0 %v797
        %1595 = vmatprep.subr.mxu0 0.0
        %1596 = vmatpush1.msra.mxu0 0.0
        %1597 = vmatprep.subr.mxu0 0.0
        %1598 = vmatpush1.msra.mxu0 0.0
        %1599 = vmatprep.subr.mxu0 0.0
        %1600 = vmatpush1.msra.mxu0 0.0
        %1601 = vmatprep.subr.mxu0 0.0
        %1602 = vmatpush1.msra.mxu0 0.0
        %1603 = vmatprep.subr.mxu0 0.0
        %1604 = vmatpush1.msra.mxu0 0.0
        %1605 = vmatprep.subr.mxu0 0.0
        %1606 = vmatpush1.msra.mxu0 0.0
        %1607 = vmatprep.subr.mxu0 0.0
        %1608 = vmatpush1.msra.mxu0 0.0
        %1609 = vmatprep.subr.mxu0 0.0
        %1610 = vmatpush1.msra.mxu0 0.0
        %1611 = vmatprep.subr.mxu0 0.0
        %1612 = vmatpush1.msra.mxu0 0.0
        %1613 = vmatprep.subr.mxu0 0.0
        %1614 = vmatpush1.msra.mxu0 0.0
        %1615 = vmatprep.subr.mxu0 0.0
        %1616 = vmatpush1.msra.mxu0 0.0
        %1617 = vmatprep.subr.mxu0 0.0
        %1618 = vmatpush1.msra.mxu0 0.0
        %1619 = vmatprep.subr.mxu0 0.0
        %1620 = vmatpush1.msra.mxu0 0.0
        %1621 = vmatprep.subr.mxu0 0.0
        %1622 = vmatpush1.msra.mxu0 0.0
        %1623 = vmatprep.subr.mxu0 0.0
        %1624 = vmatpush1.msra.mxu0 0.0
        %1625 = vmatprep.subr.mxu0 0.0
        %1626 = vmatpush1.msra.mxu0 0.0
        %1627 = vmatprep.subr.mxu0 0.0
        %1628 = vmatpush1.msra.mxu0 0.0
        %1629 = vmatprep.subr.mxu0 0.0
        %1630 = vmatpush1.msra.mxu0 0.0
        %1631 = vmatprep.subr.mxu0 0.0
        %1632 = vmatpush1.msra.mxu0 0.0
        %1633 = vmatprep.subr.mxu0 0.0
        %1634 = vmatpush1.msra.mxu0 0.0
        %1635 = vmatprep.subr.mxu0 0.0
        %1636 = vmatpush1.msra.mxu0 0.0
        %1637 = vmatprep.subr.mxu0 0.0
        %1638 = vmatpush1.msra.mxu0 0.0
        %1639 = vmatprep.subr.mxu0 0.0
        %1640 = vmatpush1.msra.mxu0 0.0
        %1641 = vmatprep.subr.mxu0 0.0
        %1642 = vmatpush1.msra.mxu0 0.0
        %1643 = vmatprep.subr.mxu0 0.0
        %1644 = vmatpush1.msra.mxu0 0.0
        %1645 = vmatprep.subr.mxu0 0.0
        %1646 = vmatpush1.msra.mxu0 0.0
        %1647 = vmatprep.subr.mxu0 0.0
        %1648 = vmatpush1.msra.mxu0 0.0
        %1649 = vmatprep.subr.mxu0 0.0
        %1650 = vmatpush1.msra.mxu0 0.0
        %1651 = vmatprep.subr.mxu0 0.0
        %1652 = vmatpush1.msra.mxu0 0.0
        %1653 = vmatprep.subr.mxu0 0.0
        %1654 = vmatpush1.msra.mxu0 0.0
        %1655 = vmatprep.mubr.f32.mxu0 0.0
        %1656 = vmatmul.mubr.f32.gmra.mrb[0].mxu0 %v1583
        %v1657 = vpop.f32.mrb[0].mxu0
        %v1658 = vadd.f32 %v1569, %v1657
        %v1659 = vpop.f32.mrb[0].mxu0
        %1660 = vmatprep.mubr.f32.mxu0 0.0
        %1661 = vmatmul.mubr.f32.gmra.mrb[0].mxu0 %v1586
        %v1662 = vpop.f32.mrb[0].mxu0
        %v1663 = vadd.f32 %v1574, %v1662
        %v1664 = vpop.f32.mrb[0].mxu0
        %1665 = vmatprep.mubr.f32.mxu0 0.0
        %1666 = vmatmul.mubr.f32.gmra.mrb[0].mxu0 %v1589
        %v1667 = vpop.f32.mrb[0].mxu0
        %v1668 = vadd.f32 %v1579, %v1667
        %v1669 = vpop.f32.mrb[0].mxu0
        %1670 = vdwg.mxu0
        %v1671 = vadd.f32 %v705, %v1658
        %v1672 = vadd.f32 %v706, %v1663
        %v1673 = vadd.f32 %v707, %v1668
        %v1674 = vld [vmem:[#allocation10] sm:$0x1]
        %v1676 = vlaneseq
        %v1677 = vshrl.u32 %v1676, 7
        %v1678 = vsub.s32 0, %v1677
        %v1679 = vrot.slane %v1674, %v1678
        %v1681 = vadd.f32 %v1671, %v1679
        %v1682 = vadd.f32 %v1672, %v1679
        %v1683 = vadd.f32 %v1673, %v1679
        %v1684 = vld [vmem:[#allocation11] sm:$0x1]
        %v1685 = vld [vmem:[#allocation13] sm:$0x1]
        %v1686 = vsel %vm649, %v1681, 0.0
        %1687 = vadd.xlane.f32.xlu0 %v1686
        %v1688 = vpop.xlane.xlu0 %1687
        %v1689 = vsel %vm649, %v1682, 0.0
        %1690 = vadd.xlane.f32.xlu0 %v1689
        %v1691 = vpop.xlane.xlu0 %1690
        %v1692 = vsel %vm649, %v1683, 0.0
        %1693 = vadd.xlane.f32.xlu0 %v1692
        %v1694 = vpop.xlane.xlu0 %1693
        %v1695 = vmul.f32 %v1688, %v659
        %v1696 = vmul.f32 %v1691, %v659
        %v1697 = vmul.f32 %v1694, %v659
        %v1698 = vsub.f32 %v1681, %v1695
        %v1699 = vsub.f32 %v1682, %v1696
        %v1700 = vsub.f32 %v1683, %v1697
        %v1701 = vmul.f32 %v1698, %v1698
        %v1702 = vmul.f32 %v1699, %v1699
        %v1703 = vmul.f32 %v1700, %v1700
        %v1704 = vsel %vm649, %v1701, 0.0
        %1705 = vadd.xlane.f32.xlu0 %v1704
        %v1706 = vpop.xlane.xlu0 %1705
        %v1707 = vsel %vm649, %v1702, 0.0
        %1708 = vadd.xlane.f32.xlu0 %v1707
        %v1709 = vpop.xlane.xlu0 %1708
        %v1710 = vsel %vm649, %v1703, 0.0
        %1711 = vadd.xlane.f32.xlu0 %v1710
        %v1712 = vpop.xlane.xlu0 %1711
        %v1713 = vmul.f32 %v1706, %v659
        %v1714 = vmul.f32 %v1709, %v659
        %v1715 = vmul.f32 %v1712, %v659
        %v1716 = vadd.f32 %v1713, 1e-12
        %v1717 = vadd.f32 %v1714, 1e-12
        %v1718 = vadd.f32 %v1715, 1e-12
        %v1719 = vrsqrt.pop %v1716
        %v1720 = vrsqrt.pop %v1717
        %v1721 = vrsqrt.pop %v1718
        %v1722 = vmul.f32 %v1698, %v1719
        %v1723 = vmul.f32 %v1699, %v1720
        %v1724 = vmul.f32 %v1700, %v1721
        %v1726 = vlaneseq
        %v1727 = vshrl.u32 %v1726, 7
        %v1728 = vsub.s32 0, %v1727
        %v1729 = vrot.slane %v1684, %v1728
        %v1731 = vmul.f32 %v1722, %v1729
        %v1732 = vmul.f32 %v1723, %v1729
        %v1733 = vmul.f32 %v1724, %v1729
        %v1735 = vlaneseq
        %v1736 = vshrl.u32 %v1735, 7
        %v1737 = vsub.s32 0, %v1736
        %v1738 = vrot.slane %v1685, %v1737
        %v1740 = vadd.f32 %v1731, %v1738
        %v1741 = vadd.f32 %v1732, %v1738
        %v1742 = vadd.f32 %v1733, %v1738
        %v1743 = vpack.c.bf16 %v1741, %v1740
        %v1744 = vpack.c.bf16 %v1742, %v1742
        %v1745 = vld [vmem:[%s10] sm:$0xf]
        %v1746 = vld [vmem:[%s10 + $0x4] sm:$0xf]
        %v1747 = vld [vmem:[%s10 + $0x8] sm:$0xf]
        %v1748 = vld [vmem:[%s10 + $0xc] sm:$0xf]
        %v1749 = vld [vmem:[%s11] sm:$0x1]
        %v1751 = vlaneseq
        %v1752 = vshrl.u32 %v1751, 7
        %v1753 = vsub.s32 0, %v1752
        %v1754 = vrot.slane %v1749, %v1753
        %v1760 = vunpack.c.l.b16 %v1745
        %v1761 = vunpack.c.l.b16 %v1746
        %v1762 = vunpack.c.l.b16 %v1747
        %v1763 = vunpack.c.l.b16 %v1748
        %v1764 = vpack.c.b16 %v1761, %v1760
        %v1765 = vpack.c.b16 %v1763, %v1762
        %v1769 = vsel %vm649, %v1743, 0
        %v1772 = vsel %vm649, %v1744, 0
        %1774 = vmatprep.subr.bf16.mxu0 0
        %1775 = vmatpush1.bf16.msra.mxu0 %v1764
        %1776 = vmatprep.subr.bf16.mxu0 0
        %1777 = vmatpush1.bf16.msra.mxu0 %v1765
        %1778 = vmatprep.subr.bf16.mxu0 0
        %1779 = vmatpush1.bf16.msra.mxu0 0
        %1780 = vmatprep.subr.bf16.mxu0 0
        %1781 = vmatpush1.bf16.msra.mxu0 0
        %1782 = vmatprep.subr.bf16.mxu0 0
        %1783 = vmatpush1.bf16.msra.mxu0 0
        %1784 = vmatprep.subr.bf16.mxu0 0
        %1785 = vmatpush1.bf16.msra.mxu0 0
        %1786 = vmatprep.subr.bf16.mxu0 0
        %1787 = vmatpush1.bf16.msra.mxu0 0
        %1788 = vmatprep.subr.bf16.mxu0 0
        %1789 = vmatpush1.bf16.msra.mxu0 0
        %1790 = vmatprep.subr.bf16.mxu0 0
        %1791 = vmatpush1.bf16.msra.mxu0 0
        %1792 = vmatprep.subr.bf16.mxu0 0
        %1793 = vmatpush1.bf16.msra.mxu0 0
        %1794 = vmatprep.subr.bf16.mxu0 0
        %1795 = vmatpush1.bf16.msra.mxu0 0
        %1796 = vmatprep.subr.bf16.mxu0 0
        %1797 = vmatpush1.bf16.msra.mxu0 0
        %1798 = vmatprep.subr.bf16.mxu0 0
        %1799 = vmatpush1.bf16.msra.mxu0 0
        %1800 = vmatprep.subr.bf16.mxu0 0
        %1801 = vmatpush1.bf16.msra.mxu0 0
        %1802 = vmatprep.subr.bf16.mxu0 0
        %1803 = vmatpush1.bf16.msra.mxu0 0
        %1804 = vmatprep.subr.bf16.mxu0 0
        %1805 = vmatpush1.bf16.msra.mxu0 0
        %1806 = vmatprep.mubr.bf16.mxu0 0
        %1807 = vmatmul.mubr.bf16.gmra.mrb[0].mxu0 %v1769
        %v1808 = vpop.f32.mrb[0].mxu0
        %v1809 = vadd.f32 %v1754, %v1808
        %v1810 = vpop.f32.mrb[0].mxu0
        %v1811 = vpop.f32.mrb[0].mxu0
        %v1812 = vadd.f32 %v1754, %v1811
        %v1813 = vpop.f32.mrb[0].mxu0
        %1814 = vmatprep.mubr.bf16.mxu0 0
        %1815 = vmatmul.mubr.bf16.gmra.mrb[0].mxu0 %v1772
        %v1816 = vpop.f32.mrb[0].mxu0
        %v1817 = vadd.f32 %v1754, %v1816
        %v1818 = vpop.f32.mrb[0].mxu0
        %v1819 = vpop.f32.mrb[0].mxu0
        %v1820 = vpop.f32.mrb[0].mxu0
        %1821 = vdwg.mxu0
        %v1822 = vmul.f32 %v1809, %v1809
        %v1823 = vmul.f32 %v1812, %v1812
        %v1824 = vmul.f32 %v1817, %v1817
        %v1825 = vmul.f32 %v1809, %v1822
        %v1826 = vmul.f32 %v1812, %v1823
        %v1827 = vmul.f32 %v1817, %v1824
        %v1828 = vmul.f32 %v1825, 0.044715
        %v1829 = vmul.f32 %v1826, 0.044715
        %v1830 = vmul.f32 %v1827, 0.044715
        %v1831 = vadd.f32 %v1809, %v1828
        %v1832 = vadd.f32 %v1812, %v1829
        %v1833 = vadd.f32 %v1817, %v1830
        %v1834 = vmul.f32 %v1831, 0.7978846
        %v1835 = vmul.f32 %v1832, 0.7978846
        %v1836 = vmul.f32 %v1833, 0.7978846
        %v1837 = vtanh.pop %v1834
        %v1838 = vtanh.pop %v1835
        %v1839 = vtanh.pop %v1836
        %v1840 = vadd.f32 %v1837, 1.0
        %v1841 = vadd.f32 %v1838, 1.0
        %v1842 = vadd.f32 %v1839, 1.0
        %v1843 = vmul.f32 %v1840, 0.5
        %v1844 = vmul.f32 %v1841, 0.5
        %v1845 = vmul.f32 %v1842, 0.5
        %v1846 = vmul.f32 %v1809, %v1843
        %v1847 = vmul.f32 %v1812, %v1844
        %v1848 = vmul.f32 %v1817, %v1845
        %v1849 = vpack.c.bf16 %v1847, %v1846
        %v1850 = vpack.c.bf16 %v1848, %v1848
        %v1851 = vld [vmem:[%s12] sm:$0xf]
        %v1852 = vld [vmem:[%s12 + $0x4] sm:$0xf]
        %v1853 = vld [vmem:[%s12 + $0x8] sm:$0xf]
        %v1854 = vld [vmem:[%s12 + $0xc] sm:$0xf]
        %v1855 = vld [vmem:[%s12 + $0x10] sm:$0xf]
        %v1856 = vld [vmem:[%s12 + $0x14] sm:$0xf]
        %v1857 = vld [vmem:[%s12 + $0x18] sm:$0xf]
        %v1858 = vld [vmem:[%s12 + $0x1c] sm:$0xf]
        %v1859 = vld [vmem:[%s13] sm:$0x1]
        %v1861 = vlaneseq
        %v1862 = vshrl.u32 %v1861, 7
        %v1863 = vsub.s32 0, %v1862
        %v1864 = vrot.slane %v1859, %v1863
        %v1874 = vunpack.c.l.b16 %v1851
        %v1875 = vunpack.c.l.b16 %v1852
        %v1876 = vunpack.c.l.b16 %v1853
        %v1877 = vunpack.c.l.b16 %v1854
        %v1878 = vunpack.c.l.b16 %v1855
        %v1879 = vunpack.c.l.b16 %v1856
        %v1880 = vunpack.c.l.b16 %v1857
        %v1881 = vunpack.c.l.b16 %v1858
        %v1882 = vpack.c.b16 %v1875, %v1874
        %v1883 = vpack.c.b16 %v1877, %v1876
        %v1884 = vpack.c.b16 %v1879, %v1878
        %v1885 = vpack.c.b16 %v1881, %v1880
        %vm1890 = vcmask 523264
        %v1892 = vsel %vm1890, %v1849, 0
        %v1895 = vsel %vm1890, %v1850, 0
        %1897 = vmatprep.subr.bf16.mxu0 0
        %1898 = vmatpush1.bf16.msra.mxu0 %v1882
        %1899 = vmatprep.subr.bf16.mxu0 0
        %1900 = vmatpush1.bf16.msra.mxu0 %v1883
        %1901 = vmatprep.subr.bf16.mxu0 0
        %1902 = vmatpush1.bf16.msra.mxu0 %v1884
        %1903 = vmatprep.subr.bf16.mxu0 0
        %1904 = vmatpush1.bf16.msra.mxu0 %v1885
        %1905 = vmatprep.subr.bf16.mxu0 0
        %1906 = vmatpush1.bf16.msra.mxu0 0
        %1907 = vmatprep.subr.bf16.mxu0 0
        %1908 = vmatpush1.bf16.msra.mxu0 0
        %1909 = vmatprep.subr.bf16.mxu0 0
        %1910 = vmatpush1.bf16.msra.mxu0 0
        %1911 = vmatprep.subr.bf16.mxu0 0
        %1912 = vmatpush1.bf16.msra.mxu0 0
        %1913 = vmatprep.subr.bf16.mxu0 0
        %1914 = vmatpush1.bf16.msra.mxu0 0
        %1915 = vmatprep.subr.bf16.mxu0 0
        %1916 = vmatpush1.bf16.msra.mxu0 0
        %1917 = vmatprep.subr.bf16.mxu0 0
        %1918 = vmatpush1.bf16.msra.mxu0 0
        %1919 = vmatprep.subr.bf16.mxu0 0
        %1920 = vmatpush1.bf16.msra.mxu0 0
        %1921 = vmatprep.subr.bf16.mxu0 0
        %1922 = vmatpush1.bf16.msra.mxu0 0
        %1923 = vmatprep.subr.bf16.mxu0 0
        %1924 = vmatpush1.bf16.msra.mxu0 0
        %1925 = vmatprep.subr.bf16.mxu0 0
        %1926 = vmatpush1.bf16.msra.mxu0 0
        %1927 = vmatprep.subr.bf16.mxu0 0
        %1928 = vmatpush1.bf16.msra.mxu0 0
        %1929 = vmatprep.mubr.bf16.mxu0 0
        %1930 = vmatmul.mubr.bf16.gmra.mrb[0].mxu0 %v1892
        %v1931 = vpop.f32.mrb[0].mxu0
        %v1932 = vadd.f32 %v1864, %v1931
        %v1933 = vpop.f32.mrb[0].mxu0
        %v1934 = vpop.f32.mrb[0].mxu0
        %v1935 = vadd.f32 %v1864, %v1934
        %v1936 = vpop.f32.mrb[0].mxu0
        %1937 = vmatprep.mubr.bf16.mxu0 0
        %1938 = vmatmul.mubr.bf16.gmra.mrb[0].mxu0 %v1895
        %v1939 = vpop.f32.mrb[0].mxu0
        %v1940 = vadd.f32 %v1864, %v1939
        %v1941 = vpop.f32.mrb[0].mxu0
        %v1942 = vpop.f32.mrb[0].mxu0
        %v1943 = vpop.f32.mrb[0].mxu0
        %1944 = vdwg.mxu0
        %v1945 = vadd.f32 %v1740, %v1932
        %v1946 = vadd.f32 %v1741, %v1935
        %v1947 = vadd.f32 %v1742, %v1940
        %v1948 = vld [vmem:[%s14] sm:$0x1]
        %v1949 = vld [vmem:[%s15] sm:$0x1]
        %v1950 = vsel %vm649, %v1945, 0.0
        %1951 = vadd.xlane.f32.xlu0 %v1950
        %v1952 = vpop.xlane.xlu0 %1951
        %v1953 = vsel %vm649, %v1946, 0.0
        %1954 = vadd.xlane.f32.xlu0 %v1953
        %v1955 = vpop.xlane.xlu0 %1954
        %v1956 = vsel %vm649, %v1947, 0.0
        %1957 = vadd.xlane.f32.xlu0 %v1956
        %v1958 = vpop.xlane.xlu0 %1957
        %v1959 = vmul.f32 %v1952, %v659
        %v1960 = vmul.f32 %v1955, %v659
        %v1961 = vmul.f32 %v1958, %v659
        %v1962 = vsub.f32 %v1945, %v1959
        %v1963 = vsub.f32 %v1946, %v1960
        %v1964 = vsub.f32 %v1947, %v1961
        %v1965 = vmul.f32 %v1962, %v1962
        %v1966 = vmul.f32 %v1963, %v1963
        %v1967 = vmul.f32 %v1964, %v1964
        %v1968 = vsel %vm649, %v1965, 0.0
        %1969 = vadd.xlane.f32.xlu0 %v1968
        %v1970 = vpop.xlane.xlu0 %1969
        %v1971 = vsel %vm649, %v1966, 0.0
        %1972 = vadd.xlane.f32.xlu0 %v1971
        %v1973 = vpop.xlane.xlu0 %1972
        %v1974 = vsel %vm649, %v1967, 0.0
        %1975 = vadd.xlane.f32.xlu0 %v1974
        %v1976 = vpop.xlane.xlu0 %1975
        %v1977 = vmul.f32 %v1970, %v659
        %v1978 = vmul.f32 %v1973, %v659
        %v1979 = vmul.f32 %v1976, %v659
        %v1980 = vadd.f32 %v1977, 1e-12
        %v1981 = vadd.f32 %v1978, 1e-12
        %v1982 = vadd.f32 %v1979, 1e-12
        %v1983 = vrsqrt.pop %v1980
        %v1984 = vrsqrt.pop %v1981
        %v1985 = vrsqrt.pop %v1982
        %v1986 = vmul.f32 %v1962, %v1983
        %v1987 = vmul.f32 %v1963, %v1984
        %v1988 = vmul.f32 %v1964, %v1985
        %v1990 = vlaneseq
        %v1991 = vshrl.u32 %v1990, 7
        %v1992 = vsub.s32 0, %v1991
        %v1993 = vrot.slane %v1948, %v1992
        %v1995 = vmul.f32 %v1986, %v1993
        %v1996 = vmul.f32 %v1987, %v1993
        %v1997 = vmul.f32 %v1988, %v1993
        %v1999 = vlaneseq
        %v2000 = vshrl.u32 %v1999, 7
        %v2001 = vsub.s32 0, %v2000
        %v2002 = vrot.slane %v1949, %v2001
        %v2004 = vadd.f32 %v1995, %v2002
        %v2005 = vadd.f32 %v1996, %v2002
        %v2006 = vadd.f32 %v1997, %v2002
        %2007 = vst.msk [vmem:[%s634] sm:$0xff] %vm649, %v2004
        %2008 = vst.msk [vmem:[%s634 + $0x8] sm:$0xff] %vm649, %v2005
        %2009 = vst.msk [vmem:[%s634 + $0x10] sm:$0xff] %vm649, %v2006
        %s2010 = sand.u32 %s390, 1
        %s2011 = scalar_lea.sflag [#allocation4], %s2010
        %s2012 = sand.u32 %s390, 1
        %s2013 = smul.addr %s2012, 24
        %s2014 = scalar_lea.vmem [#allocation14], %s2013
        // Predicated region
        $region113: #{tpu_custom_call.1} parent=83 // pred_check
          %p2015 = pneg %p400
        $region114: #{tpu_custom_call.1} parent=83 // pred_check_branch
          %2017 = sbr.rel (%p2015) target = $region116
        $region115: #{tpu_custom_call.1} parent=83 // pred_region
          %s2018 = smul.u32 3, %s36
          %s2020 = ssub.s32 384, 384
          %2021 = vsyncadd %s2011, %s2020
          %s2022 = smul.addr %s2018, 128
          %s2023 = scalar_lea.hbm %s16, %s2022
          %s2024 = sshll.u32 %s2014, 4
          %s2025 = int_to_ptr.vmem [resolvable:$true] %s2024
          %2030 = dma.vmem_to_hbm [thread:$0]  %s2025, 384, %s2023, %s2011, 128, 128, 8
        $region116: #{tpu_custom_call.1} parent=83 // pred_fallthru
          _
      $region84: #{tpu_custom_call.1} parent=5 // pred_fallthru
        _
      %p2031 = scmp.le.s32.totalorder 2, %s31
      // Predicated region
      $region117: #{tpu_custom_call.1} parent=5 // pred_check
        %p2032 = pneg %p2031
      $region118: #{tpu_custom_call.1} parent=5 // pred_check_branch
        %2034 = sbr.rel (%p2032) target = $region120
      $region119: #{tpu_custom_call.1} parent=5 // pred_region
        %s2035 = ssub.s32 %s31, 2
        // Predicated region
        $region121: #{tpu_custom_call.1} parent=119 // pred_check
          %p2036 = pneg %p406
        $region122: #{tpu_custom_call.1} parent=119 // pred_check_branch
          %2038 = sbr.rel (%p2036) target = $region124
        $region123: #{tpu_custom_call.1} parent=119 // pred_region
          %s2039 = sand.u32 %s391, 1
          %s2040 = scalar_lea.sflag [#allocation4], %s2039
          %s2041 = sand.u32 %s391, 1
          %s2042 = smul.addr %s2041, 24
          %s2043 = scalar_lea.vmem [#allocation14], %s2042
          %2044 = dma.done %s2040, 384
        $region124: #{tpu_custom_call.1} parent=119 // pred_fallthru
          _
      $region120: #{tpu_custom_call.1} parent=5 // pred_fallthru
        _
    $region6: #{tpu_custom_call.1} parent=1 // loop_footer
      %s35 = sadd.s32 1, %s31
    $region7: #{tpu_custom_call.1} parent=1 // loop_footer_branch
      %30 = sbr.rel target = $region3
    $region8: #{tpu_custom_call.1} parent=1 // loop_exit
      _
    %2045 = vsyncpa [#allocation3], 1
    %s2046 = scalar_lea.sflag [#allocation3], 1
    %2047 = vsyncpa %s2046, 1
    %2048 = vsyncpa [#allocation6], 1
    %2049 = vsyncpa [#allocation9], 1
    %2050 = vsyncpa [#allocation12], 1
    %2051 = vsyncpa [#allocation4], 1
    %s2052 = scalar_lea.sflag [#allocation4], 1
    %2053 = vsyncpa %s2052, 1

</llo_original>
